<compile_context>
chip_gen: v5e
topology: v5e:2x2
jax: 0.10.0
libtpu: 0.0.40
codegen_flags: <defaults>
</compile_context>

<pallas_src>
import functools

import jax
import jax.numpy as jnp
from jax.experimental import pallas as pl
from jax.experimental.pallas import tpu as pltpu

HIDDEN = 32          # config.data_hidden_size (small, consistent with module)
D1, D2 = 1000, 500   # head_1 / head_2 widths (fixed by the module)
NUM_CLASSES = 2      # fixed by the module

D1P, D2P = 1024, 512  # lane-padded hidden widths (multiples of 128)
NCP = 128             # lane-dense logits width (>= NUM_CLASSES)


def _round_up(x, m):
    return (x + m - 1) // m * m


def _fusion_head_kernel(x_ref, w1_ref, b1_ref, w2_ref, b2_ref, w3_ref, b3_ref,
                        logits_ref, mean_ref, *, inv_seq_len):
    """One (batch, token-tile) grid step.

    x_ref      : (1, TS, H)    f32
    w*_ref     : padded bf16 weights (resident across the grid)
    b*_ref     : padded f32 biases
    logits_ref : (1, TS, NCP)  f32 (lane-dense, sliced to 2 in the wrapper)
    mean_ref   : (1, 1, H)     f32 accumulator, resident across the token axis
    """
    s_idx = pl.program_id(1)

    x = x_ref[0]                          # (TS, H) f32
    xb = x.astype(jnp.bfloat16)           # MXU operand only; elementwise stays f32

    h1 = jnp.tanh(
        jnp.dot(xb, w1_ref[...], preferred_element_type=jnp.float32)
        + b1_ref[...])
    h2 = jnp.tanh(
        jnp.dot(h1.astype(jnp.bfloat16), w2_ref[...],
                preferred_element_type=jnp.float32)
        + b2_ref[...])
    logits = jnp.dot(h2.astype(jnp.bfloat16), w3_ref[...],
                     preferred_element_type=jnp.float32) + b3_ref[...]
    logits_ref[0] = logits                # (TS, NCP) lane-dense store

    # torch.mean(x, dim=1): accumulate partial token sums into the resident
    # output block, finalize on the last token tile.
    @pl.when(s_idx == 0)
    def _():
        mean_ref[...] = jnp.zeros_like(mean_ref)

    mean_ref[...] += jnp.sum(x, axis=0, keepdims=True)[None]   # (1, 1, H)

    @pl.when(s_idx == pl.num_programs(1) - 1)
    def _():
        mean_ref[...] = mean_ref[...] * inv_seq_len


def fusion_head(x, w1, b1, w2, b2, w3, b3, *, block_tokens=512):
    B, S, H = x.shape
    assert H == w1.shape[0]

    # Token tile: large enough to keep the MXU busy, multiple of 8 sublanes.
    TS = min(block_tokens, _round_up(S, 8))
    S_pad = _round_up(S, TS)
    if S_pad != S:
        x = jnp.pad(x, ((0, 0), (0, S_pad - S), (0, 0)))
    x = x.astype(jnp.float32)

    # Zero-pad to lane-aligned widths; bf16 matmul weights, f32 biases.
    w1p = jnp.pad(w1, ((0, 0), (0, D1P - w1.shape[1]))).astype(jnp.bfloat16)
    b1p = jnp.pad(b1, ((0, 0), (0, D1P - b1.shape[1]))).astype(jnp.float32)
    w2p = jnp.pad(w2, ((0, D1P - w2.shape[0]),
                       (0, D2P - w2.shape[1]))).astype(jnp.bfloat16)
    b2p = jnp.pad(b2, ((0, 0), (0, D2P - b2.shape[1]))).astype(jnp.float32)
    w3p = jnp.pad(w3, ((0, D2P - w3.shape[0]),
                       (0, NCP - w3.shape[1]))).astype(jnp.bfloat16)
    b3p = jnp.pad(b3, ((0, 0), (0, NCP - b3.shape[1]))).astype(jnp.float32)

    n_s = S_pad // TS
    grid = (B, n_s)

    kernel = functools.partial(_fusion_head_kernel, inv_seq_len=1.0 / S)

    def wspec(shape):
        return pl.BlockSpec(shape, lambda b, s: (0, 0))   # VMEM-resident weights

    grid_spec = pltpu.PrefetchScalarGridSpec(
        num_scalar_prefetch=0,
        grid=grid,
        in_specs=[
            pl.BlockSpec((1, TS, H), lambda b, s: (b, s, 0)),   # x tile
            wspec((H, D1P)), wspec((1, D1P)),
            wspec((D1P, D2P)), wspec((1, D2P)),
            wspec((D2P, NCP)), wspec((1, NCP)),
        ],
        out_specs=(
            pl.BlockSpec((1, TS, NCP), lambda b, s: (b, s, 0)),  # logits tile
            pl.BlockSpec((1, 1, H), lambda b, s: (b, 0, 0)),     # mean accumulator
        ),
    )
    out_shape = (
        jax.ShapeDtypeStruct((B, S_pad, NCP), jnp.float32),
        jax.ShapeDtypeStruct((B, 1, H), jnp.float32),
    )

    # VMEM budget: double-buffered weights + x/logits tiles + f32 intermediates,
    # with 2x headroom; capped well under v7x's 64 MiB physical VMEM.
    weight_bytes = (H * D1P + D1P * D2P + D2P * NCP) * 2 + (D1P + D2P + NCP) * 4
    tile_bytes = (TS * H + TS * NCP + H) * 4
    interm_bytes = TS * (D1P + D2P) * 4
    vmem_limit = int(min(max(2 * (2 * weight_bytes + 2 * tile_bytes + interm_bytes),
                             8 * 1024 * 1024),
                         32 * 1024 * 1024))

    logits_pad, mean_pad = pl.pallas_call(
        kernel,
        out_shape=out_shape,
        grid_spec=grid_spec,
        compiler_params=pltpu.CompilerParams(
            dimension_semantics=("parallel", "arbitrary"),
            vmem_limit_bytes=vmem_limit),
    )(x, w1p, b1p, w2p, b2p, w3p, b3p)

    logits = logits_pad[:, :S, :NUM_CLASSES]
    x_mean = mean_pad[:, 0, :]
    return logits, x_mean


def transformer_forward(input_ids, Index=None):
    # TODO(synk): Embeddings / Encoder class definitions are not provided in the
    # source; the transformer stage is treated as identity on an already-embedded
    # (B, S, H) token sequence and attn_weights is None (vis=False in the module).
    return input_ids, None


def fusion_forward(params, x, Index=None):
    encoded, attn_weights = transformer_forward(x, Index)
    logits, x_mean = fusion_head(encoded, *params)
    return logits, attn_weights, x_mean


def _xavier(key, shape):
    fan_in, fan_out = shape
    lim = (6.0 / (fan_in + fan_out)) ** 0.5
    return jax.random.uniform(key, shape, jnp.float32, -lim, lim)


def init_params(key):
    k1, k2, k3, k4, k5, k6 = jax.random.split(key, 6)
    w1 = _xavier(k1, (HIDDEN, D1))
    b1 = 0.01 * jax.random.normal(k2, (1, D1), jnp.float32)
    w2 = _xavier(k3, (D1, D2))
    b2 = 0.01 * jax.random.normal(k4, (1, D2), jnp.float32)
    w3 = _xavier(k5, (D2, NUM_CLASSES))
    b3 = 0.01 * jax.random.normal(k6, (1, NUM_CLASSES), jnp.float32)
    return (w1, b1, w2, b2, w3, b3)


def _reference(params, x):
    w1, b1, w2, b2, w3, b3 = params
    h1 = jnp.tanh(x @ w1 + b1)
    h2 = jnp.tanh(h1 @ w2 + b2)
    logits = h2 @ w3 + b3
    return logits, jnp.mean(x, axis=1)


if __name__ == "__main__":
    key = jax.random.PRNGKey(0)
    k_param, k_x = jax.random.split(key)

    B, S = 2, 8
    x = jax.random.normal(k_x, (B, S, HIDDEN), jnp.float32)
    params = init_params(k_param)

    logits, attn_weights, x_mean = fusion_forward(params, x)
    logits = jax.block_until_ready(logits)
    x_mean = jax.block_until_ready(x_mean)

    assert logits.shape == (B, S, NUM_CLASSES)
    assert x_mean.shape == (B, HIDDEN)

    ref_logits, ref_mean = _reference(params, x)
    # bf16 MXU operands with f32 accumulation -> small drift vs. the f32 reference.
    assert jnp.allclose(logits, ref_logits, rtol=2e-2, atol=2e-2)
    assert jnp.allclose(x_mean, ref_mean, rtol=1e-3, atol=1e-3)

    print("KERNEL_OK")
</pallas_src>

<mosaic_0001>
module attributes {stable_mosaic.version = 11 : i64} {
  func.func @_fusion_head_kernel(%arg0: i32, %arg1: i32, %arg2: memref<1x8x32xf32, #tpu.memory_space<vmem>>, %arg3: memref<32x1024xbf16, #tpu.memory_space<vmem>>, %arg4: memref<1x1024xf32, #tpu.memory_space<vmem>>, %arg5: memref<1024x512xbf16, #tpu.memory_space<vmem>>, %arg6: memref<1x512xf32, #tpu.memory_space<vmem>>, %arg7: memref<512x128xbf16, #tpu.memory_space<vmem>>, %arg8: memref<1x128xf32, #tpu.memory_space<vmem>>, %arg9: memref<1x8x128xf32, #tpu.memory_space<vmem>>, %arg10: memref<1x1x32xf32, #tpu.memory_space<vmem>>) attributes {dimension_semantics = [#tpu.dimension_semantics<parallel>, #tpu.dimension_semantics<arbitrary>], iteration_bounds = array<i64: 2, 1>, scalar_prefetch = 0 : i64, scratch_operands = 0 : i64, tpu.core_type = #tpu.core_type<tc>, window_params = [{transform_indices = @transform_0, window_bounds = array<i64: 1, 8, 32>}, {pipeline_mode = #tpu.pipeline_mode<synchronous>, transform_indices = @transform_1, window_bounds = array<i64: 32, 1024>}, {pipeline_mode = #tpu.pipeline_mode<synchronous>, transform_indices = @transform_2, window_bounds = array<i64: 1, 1024>}, {pipeline_mode = #tpu.pipeline_mode<synchronous>, transform_indices = @transform_3, window_bounds = array<i64: 1024, 512>}, {pipeline_mode = #tpu.pipeline_mode<synchronous>, transform_indices = @transform_4, window_bounds = array<i64: 1, 512>}, {pipeline_mode = #tpu.pipeline_mode<synchronous>, transform_indices = @transform_5, window_bounds = array<i64: 512, 128>}, {pipeline_mode = #tpu.pipeline_mode<synchronous>, transform_indices = @transform_6, window_bounds = array<i64: 1, 128>}, {transform_indices = @transform_7, window_bounds = array<i64: 1, 8, 128>}, {transform_indices = @transform_8, window_bounds = array<i64: 1, 1, 32>}]} {
    %c0 = arith.constant 0 : index
    %c0_0 = arith.constant 0 : index
    %c0_1 = arith.constant 0 : index
    %0 = vector.load %arg2[%c0, %c0_0, %c0_1] : memref<1x8x32xf32, #tpu.memory_space<vmem>>, vector<1x8x32xf32>
    %1 = vector.shape_cast %0 : vector<1x8x32xf32> to vector<8x32xf32>
    %2 = arith.truncf %1 : vector<8x32xf32> to vector<8x32xbf16>
    %c0_2 = arith.constant 0 : index
    %c0_3 = arith.constant 0 : index
    %3 = vector.load %arg3[%c0_2, %c0_3] : memref<32x1024xbf16, #tpu.memory_space<vmem>>, vector<32x1024xbf16>
    %cst = arith.constant dense<0.000000e+00> : vector<8x1024xf32>
    %4 = tpu.matmul %2, %3, %cst {dimension_numbers = #tpu.dot_dimension_numbers<[1], [0], [0], [1], [0, 0, 1, 1], [], []>} : vector<8x32xbf16>, vector<32x1024xbf16>, vector<8x1024xf32> -> vector<8x1024xf32>
    %c0_4 = arith.constant 0 : index
    %c0_5 = arith.constant 0 : index
    %5 = vector.load %arg4[%c0_4, %c0_5] : memref<1x1024xf32, #tpu.memory_space<vmem>>, vector<1x1024xf32>
    %6 = vector.broadcast %5 : vector<1x1024xf32> to vector<8x1024xf32>
    %7 = arith.addf %4, %6 : vector<8x1024xf32>
    %8 = math.tanh %7 : vector<8x1024xf32>
    %9 = arith.truncf %8 : vector<8x1024xf32> to vector<8x1024xbf16>
    %c0_6 = arith.constant 0 : index
    %c0_7 = arith.constant 0 : index
    %10 = vector.load %arg5[%c0_6, %c0_7] : memref<1024x512xbf16, #tpu.memory_space<vmem>>, vector<1024x512xbf16>
    %cst_8 = arith.constant dense<0.000000e+00> : vector<8x512xf32>
    %11 = tpu.matmul %9, %10, %cst_8 {dimension_numbers = #tpu.dot_dimension_numbers<[1], [0], [0], [1], [0, 0, 1, 1], [], []>} : vector<8x1024xbf16>, vector<1024x512xbf16>, vector<8x512xf32> -> vector<8x512xf32>
    %c0_9 = arith.constant 0 : index
    %c0_10 = arith.constant 0 : index
    %12 = vector.load %arg6[%c0_9, %c0_10] : memref<1x512xf32, #tpu.memory_space<vmem>>, vector<1x512xf32>
    %13 = vector.broadcast %12 : vector<1x512xf32> to vector<8x512xf32>
    %14 = arith.addf %11, %13 : vector<8x512xf32>
    %15 = math.tanh %14 : vector<8x512xf32>
    %16 = arith.truncf %15 : vector<8x512xf32> to vector<8x512xbf16>
    %c0_11 = arith.constant 0 : index
    %c0_12 = arith.constant 0 : index
    %17 = vector.load %arg7[%c0_11, %c0_12] : memref<512x128xbf16, #tpu.memory_space<vmem>>, vector<512x128xbf16>
    %cst_13 = arith.constant dense<0.000000e+00> : vector<8x128xf32>
    %18 = tpu.matmul %16, %17, %cst_13 {dimension_numbers = #tpu.dot_dimension_numbers<[1], [0], [0], [1], [0, 0, 1, 1], [], []>} : vector<8x512xbf16>, vector<512x128xbf16>, vector<8x128xf32> -> vector<8x128xf32>
    %c0_14 = arith.constant 0 : index
    %c0_15 = arith.constant 0 : index
    %19 = vector.load %arg8[%c0_14, %c0_15] : memref<1x128xf32, #tpu.memory_space<vmem>>, vector<1x128xf32>
    %20 = vector.broadcast %19 : vector<1x128xf32> to vector<8x128xf32>
    %21 = arith.addf %18, %20 : vector<8x128xf32>
    %c0_16 = arith.constant 0 : index
    %c0_17 = arith.constant 0 : index
    %c0_18 = arith.constant 0 : index
    %22 = vector.load %arg9[%c0_16, %c0_17, %c0_18] : memref<1x8x128xf32, #tpu.memory_space<vmem>>, vector<1x8x128xf32>
    %23 = vector.shape_cast %22 : vector<1x8x128xf32> to vector<8x128xf32>
    %24 = vector.shape_cast %21 : vector<8x128xf32> to vector<1x8x128xf32>
    tpu.vector_store %arg9[%c0_16, %c0_17, %c0_18], %24 {strides = array<i32>} : memref<1x8x128xf32, #tpu.memory_space<vmem>>, vector<1x8x128xf32>,
    %c0_i32 = arith.constant 0 : i32
    %25 = arith.cmpi eq, %arg1, %c0_i32 : i32
    %26 = arith.extui %25 : i1 to i32
    %c0_i32_19 = arith.constant 0 : i32
    %27 = arith.cmpi ne, %26, %c0_i32_19 : i32
    scf.if %27 {
      %cst_29 = arith.constant 0.000000e+00 : f32
      %37 = vector.broadcast %cst_29 : f32 to vector<1x1x32xf32>
      %c0_30 = arith.constant 0 : index
      %c0_31 = arith.constant 0 : index
      %c0_32 = arith.constant 0 : index
      %38 = vector.load %arg10[%c0_30, %c0_31, %c0_32] : memref<1x1x32xf32, #tpu.memory_space<vmem>>, vector<1x1x32xf32>
      tpu.vector_store %arg10[%c0_30, %c0_31, %c0_32], %37 {strides = array<i32>} : memref<1x1x32xf32, #tpu.memory_space<vmem>>, vector<1x1x32xf32>,
    } else {
    }
    %c0_20 = arith.constant 0 : index
    %c0_21 = arith.constant 0 : index
    %c0_22 = arith.constant 0 : index
    %28 = vector.load %arg10[%c0_20, %c0_21, %c0_22] : memref<1x1x32xf32, #tpu.memory_space<vmem>>, vector<1x1x32xf32>
    %cst_23 = arith.constant dense<0.000000e+00> : vector<32xf32>
    %29 = vector.multi_reduction <add>, %1, %cst_23 [0] : vector<8x32xf32> to vector<32xf32>
    %30 = vector.shape_cast %29 : vector<32xf32> to vector<1x32xf32>
    %31 = vector.shape_cast %30 : vector<1x32xf32> to vector<1x1x32xf32>
    %32 = arith.addf %28, %31 : vector<1x1x32xf32>
    %c0_24 = arith.constant 0 : index
    %c0_25 = arith.constant 0 : index
    %c0_26 = arith.constant 0 : index
    %33 = vector.load %arg10[%c0_24, %c0_25, %c0_26] : memref<1x1x32xf32, #tpu.memory_space<vmem>>, vector<1x1x32xf32>
    tpu.vector_store %arg10[%c0_24, %c0_25, %c0_26], %32 {strides = array<i32>} : memref<1x1x32xf32, #tpu.memory_space<vmem>>, vector<1x1x32xf32>,
    %c0_i32_27 = arith.constant 0 : i32
    %34 = arith.cmpi eq, %arg1, %c0_i32_27 : i32
    %35 = arith.extui %34 : i1 to i32
    %c0_i32_28 = arith.constant 0 : i32
    %36 = arith.cmpi ne, %35, %c0_i32_28 : i32
    scf.if %36 {
      %c0_29 = arith.constant 0 : index
      %c0_30 = arith.constant 0 : index
      %c0_31 = arith.constant 0 : index
      %37 = vector.load %arg10[%c0_29, %c0_30, %c0_31] : memref<1x1x32xf32, #tpu.memory_space<vmem>>, vector<1x1x32xf32>
      %cst_32 = arith.constant 1.250000e-01 : f32
      %38 = vector.broadcast %cst_32 : f32 to vector<1x1x32xf32>
      %39 = arith.mulf %37, %38 : vector<1x1x32xf32>
      %c0_33 = arith.constant 0 : index
      %c0_34 = arith.constant 0 : index
      %c0_35 = arith.constant 0 : index
      %40 = vector.load %arg10[%c0_33, %c0_34, %c0_35] : memref<1x1x32xf32, #tpu.memory_space<vmem>>, vector<1x1x32xf32>
      tpu.vector_store %arg10[%c0_33, %c0_34, %c0_35], %39 {strides = array<i32>} : memref<1x1x32xf32, #tpu.memory_space<vmem>>, vector<1x1x32xf32>,
    } else {
    }
    return
  }
  func.func @transform_0(%arg0: i32, %arg1: i32) -> (i32, i32, i32) {
    %c0_i32 = arith.constant 0 : i32
    %c0_i32_0 = arith.constant 0 : i32
    return %arg0, %arg1, %c0_i32 : i32, i32, i32
  }
  func.func @transform_1(%arg0: i32, %arg1: i32) -> (i32, i32) {
    %c0_i32 = arith.constant 0 : i32
    %c0_i32_0 = arith.constant 0 : i32
    %c0_i32_1 = arith.constant 0 : i32
    return %c0_i32, %c0_i32_0 : i32, i32
  }
  func.func @transform_2(%arg0: i32, %arg1: i32) -> (i32, i32) {
    %c0_i32 = arith.constant 0 : i32
    %c0_i32_0 = arith.constant 0 : i32
    %c0_i32_1 = arith.constant 0 : i32
    return %c0_i32, %c0_i32_0 : i32, i32
  }
  func.func @transform_3(%arg0: i32, %arg1: i32) -> (i32, i32) {
    %c0_i32 = arith.constant 0 : i32
    %c0_i32_0 = arith.constant 0 : i32
    %c0_i32_1 = arith.constant 0 : i32
    return %c0_i32, %c0_i32_0 : i32, i32
  }
  func.func @transform_4(%arg0: i32, %arg1: i32) -> (i32, i32) {
    %c0_i32 = arith.constant 0 : i32
    %c0_i32_0 = arith.constant 0 : i32
    %c0_i32_1 = arith.constant 0 : i32
    return %c0_i32, %c0_i32_0 : i32, i32
  }
  func.func @transform_5(%arg0: i32, %arg1: i32) -> (i32, i32) {
    %c0_i32 = arith.constant 0 : i32
    %c0_i32_0 = arith.constant 0 : i32
    %c0_i32_1 = arith.constant 0 : i32
    return %c0_i32, %c0_i32_0 : i32, i32
  }
  func.func @transform_6(%arg0: i32, %arg1: i32) -> (i32, i32) {
    %c0_i32 = arith.constant 0 : i32
    %c0_i32_0 = arith.constant 0 : i32
    %c0_i32_1 = arith.constant 0 : i32
    return %c0_i32, %c0_i32_0 : i32, i32
  }
  func.func @transform_7(%arg0: i32, %arg1: i32) -> (i32, i32, i32) {
    %c0_i32 = arith.constant 0 : i32
    %c0_i32_0 = arith.constant 0 : i32
    return %arg0, %arg1, %c0_i32 : i32, i32, i32
  }
  func.func @transform_8(%arg0: i32, %arg1: i32) -> (i32, i32, i32) {
    %c0_i32 = arith.constant 0 : i32
    %c0_i32_0 = arith.constant 0 : i32
    %c0_i32_1 = arith.constant 0 : i32
    return %arg0, %c0_i32, %c0_i32_0 : i32, i32, i32
  }
}

</mosaic_0001>

<llo_original>
// kernel: tpu_custom_call.1
$region0: #{tpu_custom_call.1}
  #allocation0 [shape = 'u32[]', space=smem, size = 0x4, offset = 0x4, fixed_abs, tag = 'smem constant byte address 0x4 - core index']
  #allocation1 [shape = 'u32[72,128]{1,0:T(1,128)}', space=vmem, size = 0x9000, scoped, tag = 'internal scratch']
  %s0 = inlined_call_operand.hbm [shape: f32[2,8,32], index: 0, kind: input, shape index: {}]
  %s1 = inlined_call_operand.hbm [shape: bf16[32,1024], index: 1, kind: input, shape index: {}]
  %s2 = inlined_call_operand.hbm [shape: f32[1,1024], index: 2, kind: input, shape index: {}]
  %s3 = inlined_call_operand.hbm [shape: bf16[1024,512], index: 3, kind: input, shape index: {}]
  %s4 = inlined_call_operand.hbm [shape: f32[1,512], index: 4, kind: input, shape index: {}]
  %s5 = inlined_call_operand.hbm [shape: bf16[512,128], index: 5, kind: input, shape index: {}]
  %s6 = inlined_call_operand.vmem [shape: f32[1,128], index: 6, kind: input, shape index: {}]
  %s7 = inlined_call_operand.hbm [shape: f32[2,8,128], index: 7, kind: output, shape index: {0}]
  %s8 = inlined_call_operand.hbm [shape: f32[2,1,32], index: 8, kind: output, shape index: {1}]
  %9 = xla_tuple %s7, %s8
  %s10 = sld [smem:[#allocation0]]
  $region101: #{tpu_custom_call.1} parent=0
    _
  %s12 = ssub.s32 1, %s10
  %s13 = scalar_select 0, %s12, %s10
  $region1: #{tpu_custom_call.1} parent=0
    #allocation2 [shape = 'u8[8192]{0}', space=vmem, size = 0x2000, scoped, tag = 'input window, operand 0']
    #allocation3 [shape = 's32[2]{0}', space=sflag, size = 0x8, scoped, tag = 'scoped memory for tpu_custom_call.1']
    #allocation4 [shape = 's32[2]{0}', space=sflag, size = 0x8, scoped, tag = 'scoped memory for tpu_custom_call.1']
    #allocation5 [shape = 'u8[65536]{0}', space=vmem, size = 0x10000, scoped, tag = 'input window, operand 1, single buffered']
    #allocation6 [shape = 's32[1]{0}', space=sflag, size = 0x4, scoped, tag = 'scoped memory for tpu_custom_call.1']
    #allocation7 [shape = 'u8[4096]{0}', space=vmem, size = 0x1000, scoped, tag = 'input window, operand 2, single buffered']
    #allocation8 [shape = 'u8[1048576]{0}', space=vmem, size = 0x100000, scoped, tag = 'input window, operand 3, single buffered']
    #allocation9 [shape = 's32[1]{0}', space=sflag, size = 0x4, scoped, tag = 'scoped memory for tpu_custom_call.1']
    #allocation10 [shape = 'u8[2048]{0}', space=vmem, size = 0x800, scoped, tag = 'input window, operand 4, single buffered']
    #allocation11 [shape = 'u8[131072]{0}', space=vmem, size = 0x20000, scoped, tag = 'input window, operand 5, single buffered']
    #allocation12 [shape = 's32[1]{0}', space=sflag, size = 0x4, scoped, tag = 'scoped memory for tpu_custom_call.1']
    #allocation13 [shape = 'u8[8192]{0}', space=vmem, size = 0x2000, scoped, tag = 'output window, operand 0']
    #allocation14 [shape = 'u8[1024]{0}', space=vmem, size = 0x400, scoped, tag = 'output window, operand 1']
    #allocation15 [shape = 's32[2]{0}', space=sflag, size = 0x8, scoped, tag = 'scoped memory for tpu_custom_call.1']
    %14 = vsyncpa [#allocation3], 0
    %s15 = scalar_lea.sflag [#allocation3], 1
    %16 = vsyncpa %s15, 0
    %17 = vsyncpa [#allocation6], 0
    %18 = vsyncpa [#allocation9], 0
    %19 = vsyncpa [#allocation12], 0
    %20 = vsyncpa [#allocation4], 0
    %s21 = scalar_lea.sflag [#allocation4], 1
    %22 = vsyncpa %s21, 0
    %23 = vsyncpa [#allocation15], 0
    %s24 = scalar_lea.sflag [#allocation15], 1
    %25 = vsyncpa %s24, 0
    loop: start=0, step=1, limit=4
    $region2: #{tpu_custom_call.1} parent=1 // loop_pre_header
      _
    $region3: #{tpu_custom_call.1} parent=1 // loop_header
      %s27 = sphi 0, %s31
      %p28 = scmp.ge.s32.totalorder %s27, 4
      %s34 = sphi 0, %s46
      %s35 = sphi 0, %s42
      %s36 = sphi 0, %s34
      %s37 = sphi 0, %s35
      %s38 = sphi 0, %s36
      %s39 = sphi 0, %s37
      %s51 = sphi 0, %s53
      %s54 = sphi 0, %s51
      %s55 = sphi 0, %s54
      %s71 = sphi 0, %s55
      %s75 = sphi 0, %s75
      %s77 = sphi 0, %s75
      %s78 = sphi 0, %s77
      %s92 = sphi 0, %s78
      %s96 = sphi 0, %s96
      %s98 = sphi 0, %s96
      %s99 = sphi 0, %s98
      %s113 = sphi 0, %s99
      %s117 = sphi 0, %s117
      %s119 = sphi 0, %s117
      %s120 = sphi 0, %s119
      %s134 = sphi 0, %s120
      %s138 = sphi 0, %s138
      %s140 = sphi 0, %s138
      %s141 = sphi 0, %s140
      %s155 = sphi 0, %s141
      %s159 = sphi 0, %s159
      %s161 = sphi 0, %s159
      %s162 = sphi 0, %s161
      %s176 = sphi 0, %s162
      %s180 = sphi 0, %s180
      %s182 = sphi 0, %s180
      %s183 = sphi 0, %s182
      %s197 = sphi 0, %s183
      %s205 = sphi 0, %s207
      %s208 = sphi 0, %s205
      %s209 = sphi 0, %s208
      %s225 = sphi 0, %s209
      %s231 = sphi 0, %s233
      %s234 = sphi 0, %s231
      %s235 = sphi 0, %s234
      %s251 = sphi 0, %s235
    $region4: #{tpu_custom_call.1} parent=1 // loop_header_branch
      %30 = sbr.rel (%p28) target = $region8
    $region5: #{tpu_custom_call.1} parent=1 // loop_body
      %s32 = ssub.s32 %s27, 1
      %s33 = ssub.s32 %s27, 2
      %s40 = sadd.s32 1, %s35
      %p41 = scmp.ge.s32.totalorder %s40, 1
      %s42 = scalar_select %p41, 0, %s40
      %s43 = sadd.s32 1, %s34
      %s44 = scalar_select %p41, %s43, %s34
      %p45 = scmp.ge.s32.totalorder %s44, 2
      %s46 = scalar_select %p45, 0, %s44
      %s47 = ssub.s32 %s34, %s46
      %s48 = ssub.s32 %s35, %s42
      %s49 = sor.u32 %s47, %s48
      %p50 = scmp.eq.s32.totalorder %s49, 0
      %s52 = sadd.s32 %s51, 1
      %s53 = scalar_select %p50, %s51, %s52
      %p56 = pneg %p50
      %p57 = scmp.eq.s32.totalorder %s27, 1
      %p58 = por %p56, %p57
      %p59 = scmp.ne.s32.totalorder %s51, %s54
      %p60 = scmp.eq.s32.totalorder %s27, 0
      %p61 = por %p59, %p60
      %p62 = scmp.ne.s32.totalorder %s51, %s54
      %p63 = scmp.eq.s32.totalorder %s32, 1
      %p64 = por %p62, %p63
      %p65 = scmp.ne.s32.totalorder %s54, %s55
      %p66 = scmp.eq.s32.totalorder %s32, 0
      %p67 = por %p65, %p66
      %p68 = scmp.ne.s32.totalorder %s54, %s55
      %p69 = scmp.eq.s32.totalorder %s33, 1
      %p70 = por %p68, %p69
      %p72 = scmp.ne.s32.totalorder %s55, %s71
      %p73 = scmp.eq.s32.totalorder %s33, 0
      %p74 = por %p72, %p73
      %s76 = sadd.s32 %s75, 1
      %p79 = scmp.eq.s32.totalorder %s27, 1
      %p80 = scmp.ne.s32.totalorder %s75, %s77
      %p81 = scmp.eq.s32.totalorder %s27, 0
      %p82 = por %p80, %p81
      %p83 = scmp.ne.s32.totalorder %s75, %s77
      %p84 = scmp.eq.s32.totalorder %s32, 1
      %p85 = por %p83, %p84
      %p86 = scmp.ne.s32.totalorder %s77, %s78
      %p87 = scmp.eq.s32.totalorder %s32, 0
      %p88 = por %p86, %p87
      %p89 = scmp.ne.s32.totalorder %s77, %s78
      %p90 = scmp.eq.s32.totalorder %s33, 1
      %p91 = por %p89, %p90
      %p93 = scmp.ne.s32.totalorder %s78, %s92
      %p94 = scmp.eq.s32.totalorder %s33, 0
      %p95 = por %p93, %p94
      %s97 = sadd.s32 %s96, 1
      %p100 = scmp.eq.s32.totalorder %s27, 1
      %p101 = scmp.ne.s32.totalorder %s96, %s98
      %p102 = scmp.eq.s32.totalorder %s27, 0
      %p103 = por %p101, %p102
      %p104 = scmp.ne.s32.totalorder %s96, %s98
      %p105 = scmp.eq.s32.totalorder %s32, 1
      %p106 = por %p104, %p105
      %p107 = scmp.ne.s32.totalorder %s98, %s99
      %p108 = scmp.eq.s32.totalorder %s32, 0
      %p109 = por %p107, %p108
      %p110 = scmp.ne.s32.totalorder %s98, %s99
      %p111 = scmp.eq.s32.totalorder %s33, 1
      %p112 = por %p110, %p111
      %p114 = scmp.ne.s32.totalorder %s99, %s113
      %p115 = scmp.eq.s32.totalorder %s33, 0
      %p116 = por %p114, %p115
      %s118 = sadd.s32 %s117, 1
      %p121 = scmp.eq.s32.totalorder %s27, 1
      %p122 = scmp.ne.s32.totalorder %s117, %s119
      %p123 = scmp.eq.s32.totalorder %s27, 0
      %p124 = por %p122, %p123
      %p125 = scmp.ne.s32.totalorder %s117, %s119
      %p126 = scmp.eq.s32.totalorder %s32, 1
      %p127 = por %p125, %p126
      %p128 = scmp.ne.s32.totalorder %s119, %s120
      %p129 = scmp.eq.s32.totalorder %s32, 0
      %p130 = por %p128, %p129
      %p131 = scmp.ne.s32.totalorder %s119, %s120
      %p132 = scmp.eq.s32.totalorder %s33, 1
      %p133 = por %p131, %p132
      %p135 = scmp.ne.s32.totalorder %s120, %s134
      %p136 = scmp.eq.s32.totalorder %s33, 0
      %p137 = por %p135, %p136
      %s139 = sadd.s32 %s138, 1
      %p142 = scmp.eq.s32.totalorder %s27, 1
      %p143 = scmp.ne.s32.totalorder %s138, %s140
      %p144 = scmp.eq.s32.totalorder %s27, 0
      %p145 = por %p143, %p144
      %p146 = scmp.ne.s32.totalorder %s138, %s140
      %p147 = scmp.eq.s32.totalorder %s32, 1
      %p148 = por %p146, %p147
      %p149 = scmp.ne.s32.totalorder %s140, %s141
      %p150 = scmp.eq.s32.totalorder %s32, 0
      %p151 = por %p149, %p150
      %p152 = scmp.ne.s32.totalorder %s140, %s141
      %p153 = scmp.eq.s32.totalorder %s33, 1
      %p154 = por %p152, %p153
      %p156 = scmp.ne.s32.totalorder %s141, %s155
      %p157 = scmp.eq.s32.totalorder %s33, 0
      %p158 = por %p156, %p157
      %s160 = sadd.s32 %s159, 1
      %p163 = scmp.eq.s32.totalorder %s27, 1
      %p164 = scmp.ne.s32.totalorder %s159, %s161
      %p165 = scmp.eq.s32.totalorder %s27, 0
      %p166 = por %p164, %p165
      %p167 = scmp.ne.s32.totalorder %s159, %s161
      %p168 = scmp.eq.s32.totalorder %s32, 1
      %p169 = por %p167, %p168
      %p170 = scmp.ne.s32.totalorder %s161, %s162
      %p171 = scmp.eq.s32.totalorder %s32, 0
      %p172 = por %p170, %p171
      %p173 = scmp.ne.s32.totalorder %s161, %s162
      %p174 = scmp.eq.s32.totalorder %s33, 1
      %p175 = por %p173, %p174
      %p177 = scmp.ne.s32.totalorder %s162, %s176
      %p178 = scmp.eq.s32.totalorder %s33, 0
      %p179 = por %p177, %p178
      %s181 = sadd.s32 %s180, 1
      %p184 = scmp.eq.s32.totalorder %s27, 1
      %p185 = scmp.ne.s32.totalorder %s180, %s182
      %p186 = scmp.eq.s32.totalorder %s27, 0
      %p187 = por %p185, %p186
      %p188 = scmp.ne.s32.totalorder %s180, %s182
      %p189 = scmp.eq.s32.totalorder %s32, 1
      %p190 = por %p188, %p189
      %p191 = scmp.ne.s32.totalorder %s182, %s183
      %p192 = scmp.eq.s32.totalorder %s32, 0
      %p193 = por %p191, %p192
      %p194 = scmp.ne.s32.totalorder %s182, %s183
      %p195 = scmp.eq.s32.totalorder %s33, 1
      %p196 = por %p194, %p195
      %p198 = scmp.ne.s32.totalorder %s183, %s197
      %p199 = scmp.eq.s32.totalorder %s33, 0
      %p200 = por %p198, %p199
      %s201 = ssub.s32 %s34, %s46
      %s202 = ssub.s32 %s35, %s42
      %s203 = sor.u32 %s201, %s202
      %p204 = scmp.eq.s32.totalorder %s203, 0
      %s206 = sadd.s32 %s205, 1
      %s207 = scalar_select %p204, %s205, %s206
      %p210 = pneg %p204
      %p211 = scmp.eq.s32.totalorder %s27, 1
      %p212 = por %p210, %p211
      %p213 = scmp.ne.s32.totalorder %s205, %s208
      %p214 = scmp.eq.s32.totalorder %s27, 0
      %p215 = por %p213, %p214
      %p216 = scmp.ne.s32.totalorder %s205, %s208
      %p217 = scmp.eq.s32.totalorder %s32, 1
      %p218 = por %p216, %p217
      %p219 = scmp.ne.s32.totalorder %s208, %s209
      %p220 = scmp.eq.s32.totalorder %s32, 0
      %p221 = por %p219, %p220
      %p222 = scmp.ne.s32.totalorder %s208, %s209
      %p223 = scmp.eq.s32.totalorder %s33, 1
      %p224 = por %p222, %p223
      %p226 = scmp.ne.s32.totalorder %s209, %s225
      %p227 = scmp.eq.s32.totalorder %s33, 0
      %p228 = por %p226, %p227
      %s229 = ssub.s32 %s34, %s46
      %p230 = scmp.eq.s32.totalorder %s229, 0
      %s232 = sadd.s32 %s231, 1
      %s233 = scalar_select %p230, %s231, %s232
      %p236 = pneg %p230
      %p237 = scmp.eq.s32.totalorder %s27, 1
      %p238 = por %p236, %p237
      %p239 = scmp.ne.s32.totalorder %s231, %s234
      %p240 = scmp.eq.s32.totalorder %s27, 0
      %p241 = por %p239, %p240
      %p242 = scmp.ne.s32.totalorder %s231, %s234
      %p243 = scmp.eq.s32.totalorder %s32, 1
      %p244 = por %p242, %p243
      %p245 = scmp.ne.s32.totalorder %s234, %s235
      %p246 = scmp.eq.s32.totalorder %s32, 0
      %p247 = por %p245, %p246
      %p248 = scmp.ne.s32.totalorder %s234, %s235
      %p249 = scmp.eq.s32.totalorder %s33, 1
      %p250 = por %p248, %p249
      %p252 = scmp.ne.s32.totalorder %s235, %s251
      %p253 = scmp.eq.s32.totalorder %s33, 0
      %p254 = por %p252, %p253
      %p255 = scmp.le.s32.totalorder 1, %s27
      %p256 = scmp.lt.s32.totalorder %s27, 3
      %p257 = pnand %p255, %p256
      %p258 = pneg %p257
      // Predicated region
      $region9: #{tpu_custom_call.1} parent=5 // pred_check
        _
      $region10: #{tpu_custom_call.1} parent=5 // pred_check_branch
        %260 = sbr.rel (%p257) target = $region12
      $region11: #{tpu_custom_call.1} parent=5 // pred_region
        %s261 = ssub.s32 %s27, 1
        // Predicated region
        $region13: #{tpu_custom_call.1} parent=11 // pred_check
          %p262 = pneg %p88
        $region14: #{tpu_custom_call.1} parent=11 // pred_check_branch
          %264 = sbr.rel (%p262) target = $region16
        $region15: #{tpu_custom_call.1} parent=11 // pred_region
          %266 = vsyncadd [#allocation6], 0
          %s267 = sshll.u32 %s1, 4
          %s268 = int_to_ptr.hbm [resolvable:$true] %s267
          %s269 = sshll.u32 [#allocation5], 4
          %s270 = int_to_ptr.vmem [resolvable:$true] %s269
          %275 = dma.hbm_to_vmem [thread:$0]  %s268, 2048, %s270, [#allocation6], 512, 512, 32
        $region16: #{tpu_custom_call.1} parent=11 // pred_fallthru
          _
        // Predicated region
        $region17: #{tpu_custom_call.1} parent=11 // pred_check
          %p276 = pneg %p109
        $region18: #{tpu_custom_call.1} parent=11 // pred_check_branch
          %278 = sbr.rel (%p276) target = $region20
        $region19: #{tpu_custom_call.1} parent=11 // pred_region
          %280 = vsyncadd [#allocation6], 0
          %s282 = sshll.u32 %s2, 4
          %s283 = int_to_ptr.hbm [resolvable:$true] %s282
          %s284 = sshll.u32 [#allocation7], 4
          %s285 = int_to_ptr.vmem [resolvable:$true] %s284
          %287 = dma.hbm_to_vmem [thread:$0]  %s283, 128, %s285, [#allocation6]
        $region20: #{tpu_custom_call.1} parent=11 // pred_fallthru
          _
        // Predicated region
        $region21: #{tpu_custom_call.1} parent=11 // pred_check
          %p288 = pneg %p130
        $region22: #{tpu_custom_call.1} parent=11 // pred_check_branch
          %290 = sbr.rel (%p288) target = $region24
        $region23: #{tpu_custom_call.1} parent=11 // pred_region
          %292 = vsyncadd [#allocation9], 0
          %s293 = sshll.u32 %s3, 4
          %s294 = int_to_ptr.hbm [resolvable:$true] %s293
          %s295 = sshll.u32 [#allocation8], 4
          %s296 = int_to_ptr.vmem [resolvable:$true] %s295
          %301 = dma.hbm_to_vmem [thread:$0]  %s294, 32768, %s296, [#allocation9], 256, 256, 16
        $region24: #{tpu_custom_call.1} parent=11 // pred_fallthru
          _
        // Predicated region
        $region25: #{tpu_custom_call.1} parent=11 // pred_check
          %p302 = pneg %p151
        $region26: #{tpu_custom_call.1} parent=11 // pred_check_branch
          %304 = sbr.rel (%p302) target = $region28
        $region27: #{tpu_custom_call.1} parent=11 // pred_region
          %306 = vsyncadd [#allocation9], 0
          %s308 = sshll.u32 %s4, 4
          %s309 = int_to_ptr.hbm [resolvable:$true] %s308
          %s310 = sshll.u32 [#allocation10], 4
          %s311 = int_to_ptr.vmem [resolvable:$true] %s310
          %313 = dma.hbm_to_vmem [thread:$0]  %s309, 64, %s311, [#allocation9]
        $region28: #{tpu_custom_call.1} parent=11 // pred_fallthru
          _
        // Predicated region
        $region29: #{tpu_custom_call.1} parent=11 // pred_check
          %p314 = pneg %p172
        $region30: #{tpu_custom_call.1} parent=11 // pred_check_branch
          %316 = sbr.rel (%p314) target = $region32
        $region31: #{tpu_custom_call.1} parent=11 // pred_region
          %318 = vsyncadd [#allocation12], 0
          %s319 = sshll.u32 %s5, 4
          %s320 = int_to_ptr.hbm [resolvable:$true] %s319
          %s321 = sshll.u32 [#allocation11], 4
          %s322 = int_to_ptr.vmem [resolvable:$true] %s321
          %327 = dma.hbm_to_vmem [thread:$0]  %s320, 4096, %s322, [#allocation12], 64, 64, 4
        $region32: #{tpu_custom_call.1} parent=11 // pred_fallthru
          _
        // Predicated region
        $region33: #{tpu_custom_call.1} parent=11 // pred_check
          %p328 = pneg %p193
        $region34: #{tpu_custom_call.1} parent=11 // pred_check_branch
          %330 = sbr.rel (%p328) target = $region36
        $region35: #{tpu_custom_call.1} parent=11 // pred_region
          _
        $region36: #{tpu_custom_call.1} parent=11 // pred_fallthru
          _
      $region12: #{tpu_custom_call.1} parent=5 // pred_fallthru
        _
      %p331 = scmp.lt.s32.totalorder %s27, 2
      // Predicated region
      $region37: #{tpu_custom_call.1} parent=5 // pred_check
        %p332 = pneg %p331
      $region38: #{tpu_custom_call.1} parent=5 // pred_check_branch
        %334 = sbr.rel (%p332) target = $region40
      $region39: #{tpu_custom_call.1} parent=5 // pred_region
        // Predicated region
        $region41: #{tpu_custom_call.1} parent=39 // pred_check
          %p335 = pneg %p61
        $region42: #{tpu_custom_call.1} parent=39 // pred_check_branch
          %337 = sbr.rel (%p335) target = $region44
        $region43: #{tpu_custom_call.1} parent=39 // pred_region
          %s338 = sand.u32 %s51, 1
          %s339 = scalar_lea.sflag [#allocation3], %s338
          %s340 = sand.u32 %s51, 1
          %s341 = smul.addr %s340, 8
          %s342 = scalar_lea.vmem [#allocation2], %s341
          %344 = vsyncadd %s339, 0
          %s345 = sadd.s32 %s35, %s34
          %s346 = smul.addr %s345, 8
          %s347 = scalar_lea.hbm %s0, %s346
          %s349 = sshll.u32 %s347, 4
          %s350 = int_to_ptr.hbm [resolvable:$true] %s349
          %s351 = sshll.u32 %s342, 4
          %s352 = int_to_ptr.vmem [resolvable:$true] %s351
          %354 = dma.hbm_to_vmem [thread:$0]  %s350, 128, %s352, %s339
        $region44: #{tpu_custom_call.1} parent=39 // pred_fallthru
          _
      $region40: #{tpu_custom_call.1} parent=5 // pred_fallthru
        _
      %p355 = scmp.le.s32.totalorder 1, %s27
      %p356 = scmp.lt.s32.totalorder %s27, 3
      %p357 = pnand %p355, %p356
      %p358 = pneg %p357
      // Predicated region
      $region45: #{tpu_custom_call.1} parent=5 // pred_check
        _
      $region46: #{tpu_custom_call.1} parent=5 // pred_check_branch
        %360 = sbr.rel (%p357) target = $region48
      $region47: #{tpu_custom_call.1} parent=5 // pred_region
        %s361 = ssub.s32 %s27, 1
        %s362 = sand.u32 %s54, 1
        %s363 = scalar_lea.sflag [#allocation3], %s362
        %s364 = sand.u32 %s54, 1
        %s365 = smul.addr %s364, 8
        %s366 = scalar_lea.vmem [#allocation2], %s365
        // Predicated region
        $region49: #{tpu_custom_call.1} parent=47 // pred_check
          %p367 = pneg %p67
        $region50: #{tpu_custom_call.1} parent=47 // pred_check_branch
          %369 = sbr.rel (%p367) target = $region52
        $region51: #{tpu_custom_call.1} parent=47 // pred_region
          %371 = dma.done %s363, 128
        $region52: #{tpu_custom_call.1} parent=47 // pred_fallthru
          _
        // Predicated region
        $region53: #{tpu_custom_call.1} parent=47 // pred_check
          %p372 = pneg %p88
        $region54: #{tpu_custom_call.1} parent=47 // pred_check_branch
          %374 = sbr.rel (%p372) target = $region56
        $region55: #{tpu_custom_call.1} parent=47 // pred_region
          %376 = dma.done [#allocation6], 2048
        $region56: #{tpu_custom_call.1} parent=47 // pred_fallthru
          _
        // Predicated region
        $region57: #{tpu_custom_call.1} parent=47 // pred_check
          %p377 = pneg %p109
        $region58: #{tpu_custom_call.1} parent=47 // pred_check_branch
          %379 = sbr.rel (%p377) target = $region60
        $region59: #{tpu_custom_call.1} parent=47 // pred_region
          %381 = dma.done [#allocation6], 128
        $region60: #{tpu_custom_call.1} parent=47 // pred_fallthru
          _
        // Predicated region
        $region61: #{tpu_custom_call.1} parent=47 // pred_check
          %p382 = pneg %p130
        $region62: #{tpu_custom_call.1} parent=47 // pred_check_branch
          %384 = sbr.rel (%p382) target = $region64
        $region63: #{tpu_custom_call.1} parent=47 // pred_region
          %386 = dma.done [#allocation9], 32768
        $region64: #{tpu_custom_call.1} parent=47 // pred_fallthru
          _
        // Predicated region
        $region65: #{tpu_custom_call.1} parent=47 // pred_check
          %p387 = pneg %p151
        $region66: #{tpu_custom_call.1} parent=47 // pred_check_branch
          %389 = sbr.rel (%p387) target = $region68
        $region67: #{tpu_custom_call.1} parent=47 // pred_region
          %391 = dma.done [#allocation9], 64
        $region68: #{tpu_custom_call.1} parent=47 // pred_fallthru
          _
        // Predicated region
        $region69: #{tpu_custom_call.1} parent=47 // pred_check
          %p392 = pneg %p172
        $region70: #{tpu_custom_call.1} parent=47 // pred_check_branch
          %394 = sbr.rel (%p392) target = $region72
        $region71: #{tpu_custom_call.1} parent=47 // pred_region
          %396 = dma.done [#allocation12], 4096
        $region72: #{tpu_custom_call.1} parent=47 // pred_fallthru
          _
        %s397 = sand.u32 %s54, 1
        %s398 = scalar_lea.sflag [#allocation3], %s397
        %s399 = sand.u32 %s54, 1
        %s400 = smul.addr %s399, 8
        %s401 = scalar_lea.vmem [#allocation2], %s400
        %p402 = pneg %p67
        %p403 = pneg %p64
        %p404 = pneg %p88
        %p405 = pneg %p85
        %p406 = pneg %p109
        %p407 = pneg %p106
        %p408 = pneg %p130
        %p409 = pneg %p127
        %p410 = pneg %p151
        %p411 = pneg %p148
        %p412 = pneg %p172
        %p413 = pneg %p169
        %p414 = pneg %p193
        %p415 = pneg %p190
        %p416 = pneg %p221
        %p417 = pneg %p218
        %s418 = sand.u32 %s208, 1
        %s419 = scalar_lea.sflag [#allocation4], %s418
        %s420 = sand.u32 %s208, 1
        %s421 = smul.addr %s420, 8
        %s422 = scalar_lea.vmem [#allocation13], %s421
        %p423 = pneg %p247
        %p424 = pneg %p244
        %s425 = sand.u32 %s234, 1
        %s426 = scalar_lea.sflag [#allocation15], %s425
        %s427 = sand.u32 %s234, 1
        %s428 = scalar_lea.vmem [#allocation14], %s427
        %v430 = vld [vmem:[%s366] sm:$0xff]
        %v431 = vpack.c.bf16 %v430, %v430
        %v432 = vld [vmem:[#allocation5] sm:$0xff]
        %v433 = vld [vmem:[#allocation5 + $0x8] sm:$0xff]
        %v434 = vld [vmem:[#allocation5 + $0x10] sm:$0xff]
        %v435 = vld [vmem:[#allocation5 + $0x18] sm:$0xff]
        %v436 = vld [vmem:[#allocation5 + $0x20] sm:$0xff]
        %v437 = vld [vmem:[#allocation5 + $0x28] sm:$0xff]
        %v438 = vld [vmem:[#allocation5 + $0x30] sm:$0xff]
        %v439 = vld [vmem:[#allocation5 + $0x38] sm:$0xff]
        %v440 = vld [vmem:[#allocation5 + $0x40] sm:$0xff]
        %v441 = vld [vmem:[#allocation5 + $0x48] sm:$0xff]
        %v442 = vld [vmem:[#allocation5 + $0x50] sm:$0xff]
        %v443 = vld [vmem:[#allocation5 + $0x58] sm:$0xff]
        %v444 = vld [vmem:[#allocation5 + $0x60] sm:$0xff]
        %v445 = vld [vmem:[#allocation5 + $0x68] sm:$0xff]
        %v446 = vld [vmem:[#allocation5 + $0x70] sm:$0xff]
        %v447 = vld [vmem:[#allocation5 + $0x78] sm:$0xff]
        %v448 = vld [vmem:[#allocation7] sm:$0xff]
        %v450 = vperm.slane %v448, 0
        %v451 = vperm.slane %v448, 1
        %v452 = vperm.slane %v448, 2
        %v453 = vperm.slane %v448, 3
        %v454 = vperm.slane %v448, 4
        %v455 = vperm.slane %v448, 5
        %v456 = vperm.slane %v448, 6
        %v457 = vperm.slane %v448, 7
        %v482 = vunpack.c.l.b16 %v432
        %v483 = vunpack.c.h.b16 %v432
        %v484 = vunpack.c.l.b16 %v433
        %v485 = vunpack.c.h.b16 %v433
        %v486 = vunpack.c.l.b16 %v434
        %v487 = vunpack.c.h.b16 %v434
        %v488 = vunpack.c.l.b16 %v435
        %v489 = vunpack.c.h.b16 %v435
        %v490 = vunpack.c.l.b16 %v436
        %v491 = vunpack.c.h.b16 %v436
        %v492 = vunpack.c.l.b16 %v437
        %v493 = vunpack.c.h.b16 %v437
        %v494 = vunpack.c.l.b16 %v438
        %v495 = vunpack.c.h.b16 %v438
        %v496 = vunpack.c.l.b16 %v439
        %v497 = vunpack.c.h.b16 %v439
        %v498 = vunpack.c.l.b16 %v440
        %v499 = vunpack.c.h.b16 %v440
        %v500 = vunpack.c.l.b16 %v441
        %v501 = vunpack.c.h.b16 %v441
        %v502 = vunpack.c.l.b16 %v442
        %v503 = vunpack.c.h.b16 %v442
        %v504 = vunpack.c.l.b16 %v443
        %v505 = vunpack.c.h.b16 %v443
        %v506 = vunpack.c.l.b16 %v444
        %v507 = vunpack.c.h.b16 %v444
        %v508 = vunpack.c.l.b16 %v445
        %v509 = vunpack.c.h.b16 %v445
        %v510 = vunpack.c.l.b16 %v446
        %v511 = vunpack.c.h.b16 %v446
        %v512 = vunpack.c.l.b16 %v447
        %v513 = vunpack.c.h.b16 %v447
        %v514 = vpack.c.b16 %v490, %v482
        %v515 = vpack.c.b16 %v491, %v483
        %v516 = vpack.c.b16 %v492, %v484
        %v517 = vpack.c.b16 %v493, %v485
        %v518 = vpack.c.b16 %v494, %v486
        %v519 = vpack.c.b16 %v495, %v487
        %v520 = vpack.c.b16 %v496, %v488
        %v521 = vpack.c.b16 %v497, %v489
        %v522 = vpack.c.b16 %v506, %v498
        %v523 = vpack.c.b16 %v507, %v499
        %v524 = vpack.c.b16 %v508, %v500
        %v525 = vpack.c.b16 %v509, %v501
        %v526 = vpack.c.b16 %v510, %v502
        %v527 = vpack.c.b16 %v511, %v503
        %v528 = vpack.c.b16 %v512, %v504
        %v529 = vpack.c.b16 %v513, %v505
        %vm546 = vcmask 261120
        %v548 = vsel %vm546, %v431, 0
        %550 = vmatpush.bf16.msra.mxu0 0
        %551 = vmatpush.bf16.msra.mxu0 0
        %552 = vmatpush.bf16.msra.mxu0 0
        %553 = vmatpush.bf16.msra.mxu0 0
        %554 = vmatpush.bf16.msra.mxu0 0
        %555 = vmatpush.bf16.msra.mxu0 0
        %556 = vmatpush.bf16.msra.mxu0 %v522
        %557 = vmatpush.bf16.msra.mxu0 %v514
        %558 = vmatmul.bf16.gmra.mxu0 %v548
        %v559 = vpop.f32.mrf.mxu0
        %v560 = vadd.f32 %v450, %v559
        %v561 = vpop.f32.mrf.mxu0
        %562 = vdwg.mxu0
        %563 = vmatpush.bf16.msra.mxu0 0
        %564 = vmatpush.bf16.msra.mxu0 0
        %565 = vmatpush.bf16.msra.mxu0 0
        %566 = vmatpush.bf16.msra.mxu0 0
        %567 = vmatpush.bf16.msra.mxu0 0
        %568 = vmatpush.bf16.msra.mxu0 0
        %569 = vmatpush.bf16.msra.mxu0 %v523
        %570 = vmatpush.bf16.msra.mxu0 %v515
        %571 = vmatmul.bf16.gmra.mxu0 %v548
        %v572 = vpop.f32.mrf.mxu0
        %v573 = vadd.f32 %v451, %v572
        %v574 = vpop.f32.mrf.mxu0
        %575 = vdwg.mxu0
        %576 = vmatpush.bf16.msra.mxu0 0
        %577 = vmatpush.bf16.msra.mxu0 0
        %578 = vmatpush.bf16.msra.mxu0 0
        %579 = vmatpush.bf16.msra.mxu0 0
        %580 = vmatpush.bf16.msra.mxu0 0
        %581 = vmatpush.bf16.msra.mxu0 0
        %582 = vmatpush.bf16.msra.mxu0 %v524
        %583 = vmatpush.bf16.msra.mxu0 %v516
        %584 = vmatmul.bf16.gmra.mxu0 %v548
        %v585 = vpop.f32.mrf.mxu0
        %v586 = vadd.f32 %v452, %v585
        %v587 = vpop.f32.mrf.mxu0
        %588 = vdwg.mxu0
        %589 = vmatpush.bf16.msra.mxu0 0
        %590 = vmatpush.bf16.msra.mxu0 0
        %591 = vmatpush.bf16.msra.mxu0 0
        %592 = vmatpush.bf16.msra.mxu0 0
        %593 = vmatpush.bf16.msra.mxu0 0
        %594 = vmatpush.bf16.msra.mxu0 0
        %595 = vmatpush.bf16.msra.mxu0 %v525
        %596 = vmatpush.bf16.msra.mxu0 %v517
        %597 = vmatmul.bf16.gmra.mxu0 %v548
        %v598 = vpop.f32.mrf.mxu0
        %v599 = vadd.f32 %v453, %v598
        %v600 = vpop.f32.mrf.mxu0
        %601 = vdwg.mxu0
        %602 = vmatpush.bf16.msra.mxu0 0
        %603 = vmatpush.bf16.msra.mxu0 0
        %604 = vmatpush.bf16.msra.mxu0 0
        %605 = vmatpush.bf16.msra.mxu0 0
        %606 = vmatpush.bf16.msra.mxu0 0
        %607 = vmatpush.bf16.msra.mxu0 0
        %608 = vmatpush.bf16.msra.mxu0 %v526
        %609 = vmatpush.bf16.msra.mxu0 %v518
        %610 = vmatmul.bf16.gmra.mxu0 %v548
        %v611 = vpop.f32.mrf.mxu0
        %v612 = vadd.f32 %v454, %v611
        %v613 = vpop.f32.mrf.mxu0
        %614 = vdwg.mxu0
        %615 = vmatpush.bf16.msra.mxu0 0
        %616 = vmatpush.bf16.msra.mxu0 0
        %617 = vmatpush.bf16.msra.mxu0 0
        %618 = vmatpush.bf16.msra.mxu0 0
        %619 = vmatpush.bf16.msra.mxu0 0
        %620 = vmatpush.bf16.msra.mxu0 0
        %621 = vmatpush.bf16.msra.mxu0 %v527
        %622 = vmatpush.bf16.msra.mxu0 %v519
        %623 = vmatmul.bf16.gmra.mxu0 %v548
        %v624 = vpop.f32.mrf.mxu0
        %v625 = vadd.f32 %v455, %v624
        %v626 = vpop.f32.mrf.mxu0
        %627 = vdwg.mxu0
        %628 = vmatpush.bf16.msra.mxu0 0
        %629 = vmatpush.bf16.msra.mxu0 0
        %630 = vmatpush.bf16.msra.mxu0 0
        %631 = vmatpush.bf16.msra.mxu0 0
        %632 = vmatpush.bf16.msra.mxu0 0
        %633 = vmatpush.bf16.msra.mxu0 0
        %634 = vmatpush.bf16.msra.mxu0 %v528
        %635 = vmatpush.bf16.msra.mxu0 %v520
        %636 = vmatmul.bf16.gmra.mxu0 %v548
        %v637 = vpop.f32.mrf.mxu0
        %v638 = vadd.f32 %v456, %v637
        %v639 = vpop.f32.mrf.mxu0
        %640 = vdwg.mxu0
        %641 = vmatpush.bf16.msra.mxu0 0
        %642 = vmatpush.bf16.msra.mxu0 0
        %643 = vmatpush.bf16.msra.mxu0 0
        %644 = vmatpush.bf16.msra.mxu0 0
        %645 = vmatpush.bf16.msra.mxu0 0
        %646 = vmatpush.bf16.msra.mxu0 0
        %647 = vmatpush.bf16.msra.mxu0 %v529
        %648 = vmatpush.bf16.msra.mxu0 %v521
        %649 = vmatmul.bf16.gmra.mxu0 %v548
        %v650 = vpop.f32.mrf.mxu0
        %v651 = vadd.f32 %v457, %v650
        %v652 = vpop.f32.mrf.mxu0
        %653 = vdwg.mxu0
        %v654 = vtanh.pop %v560
        %v655 = vtanh.pop %v573
        %v656 = vtanh.pop %v586
        %v657 = vtanh.pop %v599
        %v658 = vtanh.pop %v612
        %v659 = vtanh.pop %v625
        %v660 = vtanh.pop %v638
        %v661 = vtanh.pop %v651
        %v662 = vpack.c.bf16 %v654, %v654
        %v663 = vpack.c.bf16 %v655, %v655
        %v664 = vpack.c.bf16 %v656, %v656
        %v665 = vpack.c.bf16 %v657, %v657
        %v666 = vpack.c.bf16 %v658, %v658
        %v667 = vpack.c.bf16 %v659, %v659
        %v668 = vpack.c.bf16 %v660, %v660
        %v669 = vpack.c.bf16 %v661, %v661
        %v670 = vld [vmem:[#allocation8] sm:$0xff]
        %v671 = vld [vmem:[#allocation8 + $0x8] sm:$0xff]
        %v672 = vld [vmem:[#allocation8 + $0x10] sm:$0xff]
        %v673 = vld [vmem:[#allocation8 + $0x18] sm:$0xff]
        %v674 = vld [vmem:[#allocation8 + $0x20] sm:$0xff]
        %v675 = vld [vmem:[#allocation8 + $0x28] sm:$0xff]
        %v676 = vld [vmem:[#allocation8 + $0x30] sm:$0xff]
        %v677 = vld [vmem:[#allocation8 + $0x38] sm:$0xff]
        %v678 = vld [vmem:[#allocation8 + $0x40] sm:$0xff]
        %v679 = vld [vmem:[#allocation8 + $0x48] sm:$0xff]
        %v680 = vld [vmem:[#allocation8 + $0x50] sm:$0xff]
        %v681 = vld [vmem:[#allocation8 + $0x58] sm:$0xff]
        %v682 = vld [vmem:[#allocation8 + $0x60] sm:$0xff]
        %v683 = vld [vmem:[#allocation8 + $0x68] sm:$0xff]
        %v684 = vld [vmem:[#allocation8 + $0x70] sm:$0xff]
        %v685 = vld [vmem:[#allocation8 + $0x78] sm:$0xff]
        %v686 = vld [vmem:[#allocation8 + $0x80] sm:$0xff]
        %v687 = vld [vmem:[#allocation8 + $0x88] sm:$0xff]
        %v688 = vld [vmem:[#allocation8 + $0x90] sm:$0xff]
        %v689 = vld [vmem:[#allocation8 + $0x98] sm:$0xff]
        %v690 = vld [vmem:[#allocation8 + $0xa0] sm:$0xff]
        %v691 = vld [vmem:[#allocation8 + $0xa8] sm:$0xff]
        %v692 = vld [vmem:[#allocation8 + $0xb0] sm:$0xff]
        %v693 = vld [vmem:[#allocation8 + $0xb8] sm:$0xff]
        %v694 = vld [vmem:[#allocation8 + $0xc0] sm:$0xff]
        %v695 = vld [vmem:[#allocation8 + $0xc8] sm:$0xff]
        %v696 = vld [vmem:[#allocation8 + $0xd0] sm:$0xff]
        %v697 = vld [vmem:[#allocation8 + $0xd8] sm:$0xff]
        %v698 = vld [vmem:[#allocation8 + $0xe0] sm:$0xff]
        %v699 = vld [vmem:[#allocation8 + $0xe8] sm:$0xff]
        %v700 = vld [vmem:[#allocation8 + $0xf0] sm:$0xff]
        %v701 = vld [vmem:[#allocation8 + $0xf8] sm:$0xff]
        %v702 = vld [vmem:[#allocation8 + $0x100] sm:$0xff]
        %v703 = vld [vmem:[#allocation8 + $0x108] sm:$0xff]
        %v704 = vld [vmem:[#allocation8 + $0x110] sm:$0xff]
        %v705 = vld [vmem:[#allocation8 + $0x118] sm:$0xff]
        %v706 = vld [vmem:[#allocation8 + $0x120] sm:$0xff]
        %v707 = vld [vmem:[#allocation8 + $0x128] sm:$0xff]
        %v708 = vld [vmem:[#allocation8 + $0x130] sm:$0xff]
        %v709 = vld [vmem:[#allocation8 + $0x138] sm:$0xff]
        %v710 = vld [vmem:[#allocation8 + $0x140] sm:$0xff]
        %v711 = vld [vmem:[#allocation8 + $0x148] sm:$0xff]
        %v712 = vld [vmem:[#allocation8 + $0x150] sm:$0xff]
        %v713 = vld [vmem:[#allocation8 + $0x158] sm:$0xff]
        %v714 = vld [vmem:[#allocation8 + $0x160] sm:$0xff]
        %v715 = vld [vmem:[#allocation8 + $0x168] sm:$0xff]
        %v716 = vld [vmem:[#allocation8 + $0x170] sm:$0xff]
        %v717 = vld [vmem:[#allocation8 + $0x178] sm:$0xff]
        %v718 = vld [vmem:[#allocation8 + $0x180] sm:$0xff]
        %v719 = vld [vmem:[#allocation8 + $0x188] sm:$0xff]
        %v720 = vld [vmem:[#allocation8 + $0x190] sm:$0xff]
        %v721 = vld [vmem:[#allocation8 + $0x198] sm:$0xff]
        %v722 = vld [vmem:[#allocation8 + $0x1a0] sm:$0xff]
        %v723 = vld [vmem:[#allocation8 + $0x1a8] sm:$0xff]
        %v724 = vld [vmem:[#allocation8 + $0x1b0] sm:$0xff]
        %v725 = vld [vmem:[#allocation8 + $0x1b8] sm:$0xff]
        %v726 = vld [vmem:[#allocation8 + $0x1c0] sm:$0xff]
        %v727 = vld [vmem:[#allocation8 + $0x1c8] sm:$0xff]
        %v728 = vld [vmem:[#allocation8 + $0x1d0] sm:$0xff]
        %v729 = vld [vmem:[#allocation8 + $0x1d8] sm:$0xff]
        %v730 = vld [vmem:[#allocation8 + $0x1e0] sm:$0xff]
        %v731 = vld [vmem:[#allocation8 + $0x1e8] sm:$0xff]
        %v732 = vld [vmem:[#allocation8 + $0x1f0] sm:$0xff]
        %v733 = vld [vmem:[#allocation8 + $0x1f8] sm:$0xff]
        %v734 = vld [vmem:[#allocation8 + $0x200] sm:$0xff]
        %v735 = vld [vmem:[#allocation8 + $0x208] sm:$0xff]
        %v736 = vld [vmem:[#allocation8 + $0x210] sm:$0xff]
        %v737 = vld [vmem:[#allocation8 + $0x218] sm:$0xff]
        %v738 = vld [vmem:[#allocation8 + $0x220] sm:$0xff]
        %v739 = vld [vmem:[#allocation8 + $0x228] sm:$0xff]
        %v740 = vld [vmem:[#allocation8 + $0x230] sm:$0xff]
        %v741 = vld [vmem:[#allocation8 + $0x238] sm:$0xff]
        %v742 = vld [vmem:[#allocation8 + $0x240] sm:$0xff]
        %v743 = vld [vmem:[#allocation8 + $0x248] sm:$0xff]
        %v744 = vld [vmem:[#allocation8 + $0x250] sm:$0xff]
        %v745 = vld [vmem:[#allocation8 + $0x258] sm:$0xff]
        %v746 = vld [vmem:[#allocation8 + $0x260] sm:$0xff]
        %v747 = vld [vmem:[#allocation8 + $0x268] sm:$0xff]
        %v748 = vld [vmem:[#allocation8 + $0x270] sm:$0xff]
        %v749 = vld [vmem:[#allocation8 + $0x278] sm:$0xff]
        %v750 = vld [vmem:[#allocation8 + $0x280] sm:$0xff]
        %v751 = vld [vmem:[#allocation8 + $0x288] sm:$0xff]
        %v752 = vld [vmem:[#allocation8 + $0x290] sm:$0xff]
        %v753 = vld [vmem:[#allocation8 + $0x298] sm:$0xff]
        %v754 = vld [vmem:[#allocation8 + $0x2a0] sm:$0xff]
        %v755 = vld [vmem:[#allocation8 + $0x2a8] sm:$0xff]
        %v756 = vld [vmem:[#allocation8 + $0x2b0] sm:$0xff]
        %v757 = vld [vmem:[#allocation8 + $0x2b8] sm:$0xff]
        %v758 = vld [vmem:[#allocation8 + $0x2c0] sm:$0xff]
        %v759 = vld [vmem:[#allocation8 + $0x2c8] sm:$0xff]
        %v760 = vld [vmem:[#allocation8 + $0x2d0] sm:$0xff]
        %v761 = vld [vmem:[#allocation8 + $0x2d8] sm:$0xff]
        %v762 = vld [vmem:[#allocation8 + $0x2e0] sm:$0xff]
        %v763 = vld [vmem:[#allocation8 + $0x2e8] sm:$0xff]
        %v764 = vld [vmem:[#allocation8 + $0x2f0] sm:$0xff]
        %v765 = vld [vmem:[#allocation8 + $0x2f8] sm:$0xff]
        %v766 = vld [vmem:[#allocation8 + $0x300] sm:$0xff]
        %v767 = vld [vmem:[#allocation8 + $0x308] sm:$0xff]
        %v768 = vld [vmem:[#allocation8 + $0x310] sm:$0xff]
        %v769 = vld [vmem:[#allocation8 + $0x318] sm:$0xff]
        %v770 = vld [vmem:[#allocation8 + $0x320] sm:$0xff]
        %v771 = vld [vmem:[#allocation8 + $0x328] sm:$0xff]
        %v772 = vld [vmem:[#allocation8 + $0x330] sm:$0xff]
        %v773 = vld [vmem:[#allocation8 + $0x338] sm:$0xff]
        %v774 = vld [vmem:[#allocation8 + $0x340] sm:$0xff]
        %v775 = vld [vmem:[#allocation8 + $0x348] sm:$0xff]
        %v776 = vld [vmem:[#allocation8 + $0x350] sm:$0xff]
        %v777 = vld [vmem:[#allocation8 + $0x358] sm:$0xff]
        %v778 = vld [vmem:[#allocation8 + $0x360] sm:$0xff]
        %v779 = vld [vmem:[#allocation8 + $0x368] sm:$0xff]
        %v780 = vld [vmem:[#allocation8 + $0x370] sm:$0xff]
        %v781 = vld [vmem:[#allocation8 + $0x378] sm:$0xff]
        %v782 = vld [vmem:[#allocation8 + $0x380] sm:$0xff]
        %v783 = vld [vmem:[#allocation8 + $0x388] sm:$0xff]
        %v784 = vld [vmem:[#allocation8 + $0x390] sm:$0xff]
        %v785 = vld [vmem:[#allocation8 + $0x398] sm:$0xff]
        %v786 = vld [vmem:[#allocation8 + $0x3a0] sm:$0xff]
        %v787 = vld [vmem:[#allocation8 + $0x3a8] sm:$0xff]
        %v788 = vld [vmem:[#allocation8 + $0x3b0] sm:$0xff]
        %v789 = vld [vmem:[#allocation8 + $0x3b8] sm:$0xff]
        %v790 = vld [vmem:[#allocation8 + $0x3c0] sm:$0xff]
        %v791 = vld [vmem:[#allocation8 + $0x3c8] sm:$0xff]
        %v792 = vld [vmem:[#allocation8 + $0x3d0] sm:$0xff]
        %v793 = vld [vmem:[#allocation8 + $0x3d8] sm:$0xff]
        %v794 = vld [vmem:[#allocation8 + $0x3e0] sm:$0xff]
        %v795 = vld [vmem:[#allocation8 + $0x3e8] sm:$0xff]
        %v796 = vld [vmem:[#allocation8 + $0x3f0] sm:$0xff]
        %v797 = vld [vmem:[#allocation8 + $0x3f8] sm:$0xff]
        %v798 = vld [vmem:[#allocation8 + $0x400] sm:$0xff]
        %v799 = vld [vmem:[#allocation8 + $0x408] sm:$0xff]
        %v800 = vld [vmem:[#allocation8 + $0x410] sm:$0xff]
        %v801 = vld [vmem:[#allocation8 + $0x418] sm:$0xff]
        %v802 = vld [vmem:[#allocation8 + $0x420] sm:$0xff]
        %v803 = vld [vmem:[#allocation8 + $0x428] sm:$0xff]
        %v804 = vld [vmem:[#allocation8 + $0x430] sm:$0xff]
        %v805 = vld [vmem:[#allocation8 + $0x438] sm:$0xff]
        %v806 = vld [vmem:[#allocation8 + $0x440] sm:$0xff]
        %v807 = vld [vmem:[#allocation8 + $0x448] sm:$0xff]
        %v808 = vld [vmem:[#allocation8 + $0x450] sm:$0xff]
        %v809 = vld [vmem:[#allocation8 + $0x458] sm:$0xff]
        %v810 = vld [vmem:[#allocation8 + $0x460] sm:$0xff]
        %v811 = vld [vmem:[#allocation8 + $0x468] sm:$0xff]
        %v812 = vld [vmem:[#allocation8 + $0x470] sm:$0xff]
        %v813 = vld [vmem:[#allocation8 + $0x478] sm:$0xff]
        %v814 = vld [vmem:[#allocation8 + $0x480] sm:$0xff]
        %v815 = vld [vmem:[#allocation8 + $0x488] sm:$0xff]
        %v816 = vld [vmem:[#allocation8 + $0x490] sm:$0xff]
        %v817 = vld [vmem:[#allocation8 + $0x498] sm:$0xff]
        %v818 = vld [vmem:[#allocation8 + $0x4a0] sm:$0xff]
        %v819 = vld [vmem:[#allocation8 + $0x4a8] sm:$0xff]
        %v820 = vld [vmem:[#allocation8 + $0x4b0] sm:$0xff]
        %v821 = vld [vmem:[#allocation8 + $0x4b8] sm:$0xff]
        %v822 = vld [vmem:[#allocation8 + $0x4c0] sm:$0xff]
        %v823 = vld [vmem:[#allocation8 + $0x4c8] sm:$0xff]
        %v824 = vld [vmem:[#allocation8 + $0x4d0] sm:$0xff]
        %v825 = vld [vmem:[#allocation8 + $0x4d8] sm:$0xff]
        %v826 = vld [vmem:[#allocation8 + $0x4e0] sm:$0xff]
        %v827 = vld [vmem:[#allocation8 + $0x4e8] sm:$0xff]
        %v828 = vld [vmem:[#allocation8 + $0x4f0] sm:$0xff]
        %v829 = vld [vmem:[#allocation8 + $0x4f8] sm:$0xff]
        %v830 = vld [vmem:[#allocation8 + $0x500] sm:$0xff]
        %v831 = vld [vmem:[#allocation8 + $0x508] sm:$0xff]
        %v832 = vld [vmem:[#allocation8 + $0x510] sm:$0xff]
        %v833 = vld [vmem:[#allocation8 + $0x518] sm:$0xff]
        %v834 = vld [vmem:[#allocation8 + $0x520] sm:$0xff]
        %v835 = vld [vmem:[#allocation8 + $0x528] sm:$0xff]
        %v836 = vld [vmem:[#allocation8 + $0x530] sm:$0xff]
        %v837 = vld [vmem:[#allocation8 + $0x538] sm:$0xff]
        %v838 = vld [vmem:[#allocation8 + $0x540] sm:$0xff]
        %v839 = vld [vmem:[#allocation8 + $0x548] sm:$0xff]
        %v840 = vld [vmem:[#allocation8 + $0x550] sm:$0xff]
        %v841 = vld [vmem:[#allocation8 + $0x558] sm:$0xff]
        %v842 = vld [vmem:[#allocation8 + $0x560] sm:$0xff]
        %v843 = vld [vmem:[#allocation8 + $0x568] sm:$0xff]
        %v844 = vld [vmem:[#allocation8 + $0x570] sm:$0xff]
        %v845 = vld [vmem:[#allocation8 + $0x578] sm:$0xff]
        %v846 = vld [vmem:[#allocation8 + $0x580] sm:$0xff]
        %v847 = vld [vmem:[#allocation8 + $0x588] sm:$0xff]
        %v848 = vld [vmem:[#allocation8 + $0x590] sm:$0xff]
        %v849 = vld [vmem:[#allocation8 + $0x598] sm:$0xff]
        %v850 = vld [vmem:[#allocation8 + $0x5a0] sm:$0xff]
        %v851 = vld [vmem:[#allocation8 + $0x5a8] sm:$0xff]
        %v852 = vld [vmem:[#allocation8 + $0x5b0] sm:$0xff]
        %v853 = vld [vmem:[#allocation8 + $0x5b8] sm:$0xff]
        %v854 = vld [vmem:[#allocation8 + $0x5c0] sm:$0xff]
        %v855 = vld [vmem:[#allocation8 + $0x5c8] sm:$0xff]
        %v856 = vld [vmem:[#allocation8 + $0x5d0] sm:$0xff]
        %v857 = vld [vmem:[#allocation8 + $0x5d8] sm:$0xff]
        %v858 = vld [vmem:[#allocation8 + $0x5e0] sm:$0xff]
        %v859 = vld [vmem:[#allocation8 + $0x5e8] sm:$0xff]
        %v860 = vld [vmem:[#allocation8 + $0x5f0] sm:$0xff]
        %v861 = vld [vmem:[#allocation8 + $0x5f8] sm:$0xff]
        %v862 = vld [vmem:[#allocation8 + $0x600] sm:$0xff]
        %v863 = vld [vmem:[#allocation8 + $0x608] sm:$0xff]
        %v864 = vld [vmem:[#allocation8 + $0x610] sm:$0xff]
        %v865 = vld [vmem:[#allocation8 + $0x618] sm:$0xff]
        %v866 = vld [vmem:[#allocation8 + $0x620] sm:$0xff]
        %v867 = vld [vmem:[#allocation8 + $0x628] sm:$0xff]
        %v868 = vld [vmem:[#allocation8 + $0x630] sm:$0xff]
        %v869 = vld [vmem:[#allocation8 + $0x638] sm:$0xff]
        %v870 = vld [vmem:[#allocation8 + $0x640] sm:$0xff]
        %v871 = vld [vmem:[#allocation8 + $0x648] sm:$0xff]
        %v872 = vld [vmem:[#allocation8 + $0x650] sm:$0xff]
        %v873 = vld [vmem:[#allocation8 + $0x658] sm:$0xff]
        %v874 = vld [vmem:[#allocation8 + $0x660] sm:$0xff]
        %v875 = vld [vmem:[#allocation8 + $0x668] sm:$0xff]
        %v876 = vld [vmem:[#allocation8 + $0x670] sm:$0xff]
        %v877 = vld [vmem:[#allocation8 + $0x678] sm:$0xff]
        %v878 = vld [vmem:[#allocation8 + $0x680] sm:$0xff]
        %v879 = vld [vmem:[#allocation8 + $0x688] sm:$0xff]
        %v880 = vld [vmem:[#allocation8 + $0x690] sm:$0xff]
        %v881 = vld [vmem:[#allocation8 + $0x698] sm:$0xff]
        %v882 = vld [vmem:[#allocation8 + $0x6a0] sm:$0xff]
        %v883 = vld [vmem:[#allocation8 + $0x6a8] sm:$0xff]
        %v884 = vld [vmem:[#allocation8 + $0x6b0] sm:$0xff]
        %v885 = vld [vmem:[#allocation8 + $0x6b8] sm:$0xff]
        %v886 = vld [vmem:[#allocation8 + $0x6c0] sm:$0xff]
        %v887 = vld [vmem:[#allocation8 + $0x6c8] sm:$0xff]
        %v888 = vld [vmem:[#allocation8 + $0x6d0] sm:$0xff]
        %v889 = vld [vmem:[#allocation8 + $0x6d8] sm:$0xff]
        %v890 = vld [vmem:[#allocation8 + $0x6e0] sm:$0xff]
        %v891 = vld [vmem:[#allocation8 + $0x6e8] sm:$0xff]
        %v892 = vld [vmem:[#allocation8 + $0x6f0] sm:$0xff]
        %v893 = vld [vmem:[#allocation8 + $0x6f8] sm:$0xff]
        %v894 = vld [vmem:[#allocation8 + $0x700] sm:$0xff]
        %v895 = vld [vmem:[#allocation8 + $0x708] sm:$0xff]
        %v896 = vld [vmem:[#allocation8 + $0x710] sm:$0xff]
        %v897 = vld [vmem:[#allocation8 + $0x718] sm:$0xff]
        %v898 = vld [vmem:[#allocation8 + $0x720] sm:$0xff]
        %v899 = vld [vmem:[#allocation8 + $0x728] sm:$0xff]
        %v900 = vld [vmem:[#allocation8 + $0x730] sm:$0xff]
        %v901 = vld [vmem:[#allocation8 + $0x738] sm:$0xff]
        %v902 = vld [vmem:[#allocation8 + $0x740] sm:$0xff]
        %v903 = vld [vmem:[#allocation8 + $0x748] sm:$0xff]
        %v904 = vld [vmem:[#allocation8 + $0x750] sm:$0xff]
        %v905 = vld [vmem:[#allocation8 + $0x758] sm:$0xff]
        %v906 = vld [vmem:[#allocation8 + $0x760] sm:$0xff]
        %v907 = vld [vmem:[#allocation8 + $0x768] sm:$0xff]
        %v908 = vld [vmem:[#allocation8 + $0x770] sm:$0xff]
        %v909 = vld [vmem:[#allocation8 + $0x778] sm:$0xff]
        %v910 = vld [vmem:[#allocation8 + $0x780] sm:$0xff]
        %v911 = vld [vmem:[#allocation8 + $0x788] sm:$0xff]
        %v912 = vld [vmem:[#allocation8 + $0x790] sm:$0xff]
        %v913 = vld [vmem:[#allocation8 + $0x798] sm:$0xff]
        %v914 = vld [vmem:[#allocation8 + $0x7a0] sm:$0xff]
        %v915 = vld [vmem:[#allocation8 + $0x7a8] sm:$0xff]
        %v916 = vld [vmem:[#allocation8 + $0x7b0] sm:$0xff]
        %v917 = vld [vmem:[#allocation8 + $0x7b8] sm:$0xff]
        %v918 = vld [vmem:[#allocation8 + $0x7c0] sm:$0xff]
        %v919 = vld [vmem:[#allocation8 + $0x7c8] sm:$0xff]
        %v920 = vld [vmem:[#allocation8 + $0x7d0] sm:$0xff]
        %v921 = vld [vmem:[#allocation8 + $0x7d8] sm:$0xff]
        %v922 = vld [vmem:[#allocation8 + $0x7e0] sm:$0xff]
        %v923 = vld [vmem:[#allocation8 + $0x7e8] sm:$0xff]
        %v924 = vld [vmem:[#allocation8 + $0x7f0] sm:$0xff]
        %v925 = vld [vmem:[#allocation8 + $0x7f8] sm:$0xff]
        %v926 = vld [vmem:[#allocation10] sm:$0xf]
        %v928 = vperm.slane %v926, 0
        %v929 = vperm.slane %v926, 1
        %v930 = vperm.slane %v926, 2
        %v931 = vperm.slane %v926, 3
        %v1192 = vunpack.c.l.b16 %v670
        %v1193 = vunpack.c.h.b16 %v670
        %v1194 = vunpack.c.l.b16 %v671
        %v1195 = vunpack.c.h.b16 %v671
        %v1196 = vunpack.c.l.b16 %v672
        %v1197 = vunpack.c.h.b16 %v672
        %v1198 = vunpack.c.l.b16 %v673
        %v1199 = vunpack.c.h.b16 %v673
        %v1200 = vunpack.c.l.b16 %v674
        %v1201 = vunpack.c.h.b16 %v674
        %v1202 = vunpack.c.l.b16 %v675
        %v1203 = vunpack.c.h.b16 %v675
        %v1204 = vunpack.c.l.b16 %v676
        %v1205 = vunpack.c.h.b16 %v676
        %v1206 = vunpack.c.l.b16 %v677
        %v1207 = vunpack.c.h.b16 %v677
        %v1208 = vunpack.c.l.b16 %v678
        %v1209 = vunpack.c.h.b16 %v678
        %v1210 = vunpack.c.l.b16 %v679
        %v1211 = vunpack.c.h.b16 %v679
        %v1212 = vunpack.c.l.b16 %v680
        %v1213 = vunpack.c.h.b16 %v680
        %v1214 = vunpack.c.l.b16 %v681
        %v1215 = vunpack.c.h.b16 %v681
        %v1216 = vunpack.c.l.b16 %v682
        %v1217 = vunpack.c.h.b16 %v682
        %v1218 = vunpack.c.l.b16 %v683
        %v1219 = vunpack.c.h.b16 %v683
        %v1220 = vunpack.c.l.b16 %v684
        %v1221 = vunpack.c.h.b16 %v684
        %v1222 = vunpack.c.l.b16 %v685
        %v1223 = vunpack.c.h.b16 %v685
        %v1224 = vunpack.c.l.b16 %v686
        %v1225 = vunpack.c.h.b16 %v686
        %v1226 = vunpack.c.l.b16 %v687
        %v1227 = vunpack.c.h.b16 %v687
        %v1228 = vunpack.c.l.b16 %v688
        %v1229 = vunpack.c.h.b16 %v688
        %v1230 = vunpack.c.l.b16 %v689
        %v1231 = vunpack.c.h.b16 %v689
        %v1232 = vunpack.c.l.b16 %v690
        %v1233 = vunpack.c.h.b16 %v690
        %v1234 = vunpack.c.l.b16 %v691
        %v1235 = vunpack.c.h.b16 %v691
        %v1236 = vunpack.c.l.b16 %v692
        %v1237 = vunpack.c.h.b16 %v692
        %v1238 = vunpack.c.l.b16 %v693
        %v1239 = vunpack.c.h.b16 %v693
        %v1240 = vunpack.c.l.b16 %v694
        %v1241 = vunpack.c.h.b16 %v694
        %v1242 = vunpack.c.l.b16 %v695
        %v1243 = vunpack.c.h.b16 %v695
        %v1244 = vunpack.c.l.b16 %v696
        %v1245 = vunpack.c.h.b16 %v696
        %v1246 = vunpack.c.l.b16 %v697
        %v1247 = vunpack.c.h.b16 %v697
        %v1248 = vunpack.c.l.b16 %v698
        %v1249 = vunpack.c.h.b16 %v698
        %v1250 = vunpack.c.l.b16 %v699
        %v1251 = vunpack.c.h.b16 %v699
        %v1252 = vunpack.c.l.b16 %v700
        %v1253 = vunpack.c.h.b16 %v700
        %v1254 = vunpack.c.l.b16 %v701
        %v1255 = vunpack.c.h.b16 %v701
        %v1256 = vunpack.c.l.b16 %v702
        %v1257 = vunpack.c.h.b16 %v702
        %v1258 = vunpack.c.l.b16 %v703
        %v1259 = vunpack.c.h.b16 %v703
        %v1260 = vunpack.c.l.b16 %v704
        %v1261 = vunpack.c.h.b16 %v704
        %v1262 = vunpack.c.l.b16 %v705
        %v1263 = vunpack.c.h.b16 %v705
        %v1264 = vunpack.c.l.b16 %v706
        %v1265 = vunpack.c.h.b16 %v706
        %v1266 = vunpack.c.l.b16 %v707
        %v1267 = vunpack.c.h.b16 %v707
        %v1268 = vunpack.c.l.b16 %v708
        %v1269 = vunpack.c.h.b16 %v708
        %v1270 = vunpack.c.l.b16 %v709
        %v1271 = vunpack.c.h.b16 %v709
        %v1272 = vunpack.c.l.b16 %v710
        %v1273 = vunpack.c.h.b16 %v710
        %v1274 = vunpack.c.l.b16 %v711
        %v1275 = vunpack.c.h.b16 %v711
        %v1276 = vunpack.c.l.b16 %v712
        %v1277 = vunpack.c.h.b16 %v712
        %v1278 = vunpack.c.l.b16 %v713
        %v1279 = vunpack.c.h.b16 %v713
        %v1280 = vunpack.c.l.b16 %v714
        %v1281 = vunpack.c.h.b16 %v714
        %v1282 = vunpack.c.l.b16 %v715
        %v1283 = vunpack.c.h.b16 %v715
        %v1284 = vunpack.c.l.b16 %v716
        %v1285 = vunpack.c.h.b16 %v716
        %v1286 = vunpack.c.l.b16 %v717
        %v1287 = vunpack.c.h.b16 %v717
        %v1288 = vunpack.c.l.b16 %v718
        %v1289 = vunpack.c.h.b16 %v718
        %v1290 = vunpack.c.l.b16 %v719
        %v1291 = vunpack.c.h.b16 %v719
        %v1292 = vunpack.c.l.b16 %v720
        %v1293 = vunpack.c.h.b16 %v720
        %v1294 = vunpack.c.l.b16 %v721
        %v1295 = vunpack.c.h.b16 %v721
        %v1296 = vunpack.c.l.b16 %v722
        %v1297 = vunpack.c.h.b16 %v722
        %v1298 = vunpack.c.l.b16 %v723
        %v1299 = vunpack.c.h.b16 %v723
        %v1300 = vunpack.c.l.b16 %v724
        %v1301 = vunpack.c.h.b16 %v724
        %v1302 = vunpack.c.l.b16 %v725
        %v1303 = vunpack.c.h.b16 %v725
        %v1304 = vunpack.c.l.b16 %v726
        %v1305 = vunpack.c.h.b16 %v726
        %v1306 = vunpack.c.l.b16 %v727
        %v1307 = vunpack.c.h.b16 %v727
        %v1308 = vunpack.c.l.b16 %v728
        %v1309 = vunpack.c.h.b16 %v728
        %v1310 = vunpack.c.l.b16 %v729
        %v1311 = vunpack.c.h.b16 %v729
        %v1312 = vunpack.c.l.b16 %v730
        %v1313 = vunpack.c.h.b16 %v730
        %v1314 = vunpack.c.l.b16 %v731
        %v1315 = vunpack.c.h.b16 %v731
        %v1316 = vunpack.c.l.b16 %v732
        %v1317 = vunpack.c.h.b16 %v732
        %v1318 = vunpack.c.l.b16 %v733
        %v1319 = vunpack.c.h.b16 %v733
        %v1320 = vunpack.c.l.b16 %v734
        %v1321 = vunpack.c.h.b16 %v734
        %v1322 = vunpack.c.l.b16 %v735
        %v1323 = vunpack.c.h.b16 %v735
        %v1324 = vunpack.c.l.b16 %v736
        %v1325 = vunpack.c.h.b16 %v736
        %v1326 = vunpack.c.l.b16 %v737
        %v1327 = vunpack.c.h.b16 %v737
        %v1328 = vunpack.c.l.b16 %v738
        %v1329 = vunpack.c.h.b16 %v738
        %v1330 = vunpack.c.l.b16 %v739
        %v1331 = vunpack.c.h.b16 %v739
        %v1332 = vunpack.c.l.b16 %v740
        %v1333 = vunpack.c.h.b16 %v740
        %v1334 = vunpack.c.l.b16 %v741
        %v1335 = vunpack.c.h.b16 %v741
        %v1336 = vunpack.c.l.b16 %v742
        %v1337 = vunpack.c.h.b16 %v742
        %v1338 = vunpack.c.l.b16 %v743
        %v1339 = vunpack.c.h.b16 %v743
        %v1340 = vunpack.c.l.b16 %v744
        %v1341 = vunpack.c.h.b16 %v744
        %v1342 = vunpack.c.l.b16 %v745
        %v1343 = vunpack.c.h.b16 %v745
        %v1344 = vunpack.c.l.b16 %v746
        %v1345 = vunpack.c.h.b16 %v746
        %v1346 = vunpack.c.l.b16 %v747
        %v1347 = vunpack.c.h.b16 %v747
        %v1348 = vunpack.c.l.b16 %v748
        %v1349 = vunpack.c.h.b16 %v748
        %v1350 = vunpack.c.l.b16 %v749
        %v1351 = vunpack.c.h.b16 %v749
        %v1352 = vunpack.c.l.b16 %v750
        %v1353 = vunpack.c.h.b16 %v750
        %v1354 = vunpack.c.l.b16 %v751
        %v1355 = vunpack.c.h.b16 %v751
        %v1356 = vunpack.c.l.b16 %v752
        %v1357 = vunpack.c.h.b16 %v752
        %v1358 = vunpack.c.l.b16 %v753
        %v1359 = vunpack.c.h.b16 %v753
        %v1360 = vunpack.c.l.b16 %v754
        %v1361 = vunpack.c.h.b16 %v754
        %v1362 = vunpack.c.l.b16 %v755
        %v1363 = vunpack.c.h.b16 %v755
        %v1364 = vunpack.c.l.b16 %v756
        %v1365 = vunpack.c.h.b16 %v756
        %v1366 = vunpack.c.l.b16 %v757
        %v1367 = vunpack.c.h.b16 %v757
        %v1368 = vunpack.c.l.b16 %v758
        %v1369 = vunpack.c.h.b16 %v758
        %v1370 = vunpack.c.l.b16 %v759
        %v1371 = vunpack.c.h.b16 %v759
        %v1372 = vunpack.c.l.b16 %v760
        %v1373 = vunpack.c.h.b16 %v760
        %v1374 = vunpack.c.l.b16 %v761
        %v1375 = vunpack.c.h.b16 %v761
        %v1376 = vunpack.c.l.b16 %v762
        %v1377 = vunpack.c.h.b16 %v762
        %v1378 = vunpack.c.l.b16 %v763
        %v1379 = vunpack.c.h.b16 %v763
        %v1380 = vunpack.c.l.b16 %v764
        %v1381 = vunpack.c.h.b16 %v764
        %v1382 = vunpack.c.l.b16 %v765
        %v1383 = vunpack.c.h.b16 %v765
        %v1384 = vunpack.c.l.b16 %v766
        %v1385 = vunpack.c.h.b16 %v766
        %v1386 = vunpack.c.l.b16 %v767
        %v1387 = vunpack.c.h.b16 %v767
        %v1388 = vunpack.c.l.b16 %v768
        %v1389 = vunpack.c.h.b16 %v768
        %v1390 = vunpack.c.l.b16 %v769
        %v1391 = vunpack.c.h.b16 %v769
        %v1392 = vunpack.c.l.b16 %v770
        %v1393 = vunpack.c.h.b16 %v770
        %v1394 = vunpack.c.l.b16 %v771
        %v1395 = vunpack.c.h.b16 %v771
        %v1396 = vunpack.c.l.b16 %v772
        %v1397 = vunpack.c.h.b16 %v772
        %v1398 = vunpack.c.l.b16 %v773
        %v1399 = vunpack.c.h.b16 %v773
        %v1400 = vunpack.c.l.b16 %v774
        %v1401 = vunpack.c.h.b16 %v774
        %v1402 = vunpack.c.l.b16 %v775
        %v1403 = vunpack.c.h.b16 %v775
        %v1404 = vunpack.c.l.b16 %v776
        %v1405 = vunpack.c.h.b16 %v776
        %v1406 = vunpack.c.l.b16 %v777
        %v1407 = vunpack.c.h.b16 %v777
        %v1408 = vunpack.c.l.b16 %v778
        %v1409 = vunpack.c.h.b16 %v778
        %v1410 = vunpack.c.l.b16 %v779
        %v1411 = vunpack.c.h.b16 %v779
        %v1412 = vunpack.c.l.b16 %v780
        %v1413 = vunpack.c.h.b16 %v780
        %v1414 = vunpack.c.l.b16 %v781
        %v1415 = vunpack.c.h.b16 %v781
        %v1416 = vunpack.c.l.b16 %v782
        %v1417 = vunpack.c.h.b16 %v782
        %v1418 = vunpack.c.l.b16 %v783
        %v1419 = vunpack.c.h.b16 %v783
        %v1420 = vunpack.c.l.b16 %v784
        %v1421 = vunpack.c.h.b16 %v784
        %v1422 = vunpack.c.l.b16 %v785
        %v1423 = vunpack.c.h.b16 %v785
        %v1424 = vunpack.c.l.b16 %v786
        %v1425 = vunpack.c.h.b16 %v786
        %v1426 = vunpack.c.l.b16 %v787
        %v1427 = vunpack.c.h.b16 %v787
        %v1428 = vunpack.c.l.b16 %v788
        %v1429 = vunpack.c.h.b16 %v788
        %v1430 = vunpack.c.l.b16 %v789
        %v1431 = vunpack.c.h.b16 %v789
        %v1432 = vunpack.c.l.b16 %v790
        %v1433 = vunpack.c.h.b16 %v790
        %v1434 = vunpack.c.l.b16 %v791
        %v1435 = vunpack.c.h.b16 %v791
        %v1436 = vunpack.c.l.b16 %v792
        %v1437 = vunpack.c.h.b16 %v792
        %v1438 = vunpack.c.l.b16 %v793
        %v1439 = vunpack.c.h.b16 %v793
        %v1440 = vunpack.c.l.b16 %v794
        %v1441 = vunpack.c.h.b16 %v794
        %v1442 = vunpack.c.l.b16 %v795
        %v1443 = vunpack.c.h.b16 %v795
        %v1444 = vunpack.c.l.b16 %v796
        %v1445 = vunpack.c.h.b16 %v796
        %v1446 = vunpack.c.l.b16 %v797
        %v1447 = vunpack.c.h.b16 %v797
        %v1448 = vunpack.c.l.b16 %v798
        %v1449 = vunpack.c.h.b16 %v798
        %v1450 = vunpack.c.l.b16 %v799
        %v1451 = vunpack.c.h.b16 %v799
        %v1452 = vunpack.c.l.b16 %v800
        %v1453 = vunpack.c.h.b16 %v800
        %v1454 = vunpack.c.l.b16 %v801
        %v1455 = vunpack.c.h.b16 %v801
        %v1456 = vunpack.c.l.b16 %v802
        %v1457 = vunpack.c.h.b16 %v802
        %v1458 = vunpack.c.l.b16 %v803
        %v1459 = vunpack.c.h.b16 %v803
        %v1460 = vunpack.c.l.b16 %v804
        %v1461 = vunpack.c.h.b16 %v804
        %v1462 = vunpack.c.l.b16 %v805
        %v1463 = vunpack.c.h.b16 %v805
        %v1464 = vunpack.c.l.b16 %v806
        %v1465 = vunpack.c.h.b16 %v806
        %v1466 = vunpack.c.l.b16 %v807
        %v1467 = vunpack.c.h.b16 %v807
        %v1468 = vunpack.c.l.b16 %v808
        %v1469 = vunpack.c.h.b16 %v808
        %v1470 = vunpack.c.l.b16 %v809
        %v1471 = vunpack.c.h.b16 %v809
        %v1472 = vunpack.c.l.b16 %v810
        %v1473 = vunpack.c.h.b16 %v810
        %v1474 = vunpack.c.l.b16 %v811
        %v1475 = vunpack.c.h.b16 %v811
        %v1476 = vunpack.c.l.b16 %v812
        %v1477 = vunpack.c.h.b16 %v812
        %v1478 = vunpack.c.l.b16 %v813
        %v1479 = vunpack.c.h.b16 %v813
        %v1480 = vunpack.c.l.b16 %v814
        %v1481 = vunpack.c.h.b16 %v814
        %v1482 = vunpack.c.l.b16 %v815
        %v1483 = vunpack.c.h.b16 %v815
        %v1484 = vunpack.c.l.b16 %v816
        %v1485 = vunpack.c.h.b16 %v816
        %v1486 = vunpack.c.l.b16 %v817
        %v1487 = vunpack.c.h.b16 %v817
        %v1488 = vunpack.c.l.b16 %v818
        %v1489 = vunpack.c.h.b16 %v818
        %v1490 = vunpack.c.l.b16 %v819
        %v1491 = vunpack.c.h.b16 %v819
        %v1492 = vunpack.c.l.b16 %v820
        %v1493 = vunpack.c.h.b16 %v820
        %v1494 = vunpack.c.l.b16 %v821
        %v1495 = vunpack.c.h.b16 %v821
        %v1496 = vunpack.c.l.b16 %v822
        %v1497 = vunpack.c.h.b16 %v822
        %v1498 = vunpack.c.l.b16 %v823
        %v1499 = vunpack.c.h.b16 %v823
        %v1500 = vunpack.c.l.b16 %v824
        %v1501 = vunpack.c.h.b16 %v824
        %v1502 = vunpack.c.l.b16 %v825
        %v1503 = vunpack.c.h.b16 %v825
        %v1504 = vunpack.c.l.b16 %v826
        %v1505 = vunpack.c.h.b16 %v826
        %v1506 = vunpack.c.l.b16 %v827
        %v1507 = vunpack.c.h.b16 %v827
        %v1508 = vunpack.c.l.b16 %v828
        %v1509 = vunpack.c.h.b16 %v828
        %v1510 = vunpack.c.l.b16 %v829
        %v1511 = vunpack.c.h.b16 %v829
        %v1512 = vunpack.c.l.b16 %v830
        %v1513 = vunpack.c.h.b16 %v830
        %v1514 = vunpack.c.l.b16 %v831
        %v1515 = vunpack.c.h.b16 %v831
        %v1516 = vunpack.c.l.b16 %v832
        %v1517 = vunpack.c.h.b16 %v832
        %v1518 = vunpack.c.l.b16 %v833
        %v1519 = vunpack.c.h.b16 %v833
        %v1520 = vunpack.c.l.b16 %v834
        %v1521 = vunpack.c.h.b16 %v834
        %v1522 = vunpack.c.l.b16 %v835
        %v1523 = vunpack.c.h.b16 %v835
        %v1524 = vunpack.c.l.b16 %v836
        %v1525 = vunpack.c.h.b16 %v836
        %v1526 = vunpack.c.l.b16 %v837
        %v1527 = vunpack.c.h.b16 %v837
        %v1528 = vunpack.c.l.b16 %v838
        %v1529 = vunpack.c.h.b16 %v838
        %v1530 = vunpack.c.l.b16 %v839
        %v1531 = vunpack.c.h.b16 %v839
        %v1532 = vunpack.c.l.b16 %v840
        %v1533 = vunpack.c.h.b16 %v840
        %v1534 = vunpack.c.l.b16 %v841
        %v1535 = vunpack.c.h.b16 %v841
        %v1536 = vunpack.c.l.b16 %v842
        %v1537 = vunpack.c.h.b16 %v842
        %v1538 = vunpack.c.l.b16 %v843
        %v1539 = vunpack.c.h.b16 %v843
        %v1540 = vunpack.c.l.b16 %v844
        %v1541 = vunpack.c.h.b16 %v844
        %v1542 = vunpack.c.l.b16 %v845
        %v1543 = vunpack.c.h.b16 %v845
        %v1544 = vunpack.c.l.b16 %v846
        %v1545 = vunpack.c.h.b16 %v846
        %v1546 = vunpack.c.l.b16 %v847
        %v1547 = vunpack.c.h.b16 %v847
        %v1548 = vunpack.c.l.b16 %v848
        %v1549 = vunpack.c.h.b16 %v848
        %v1550 = vunpack.c.l.b16 %v849
        %v1551 = vunpack.c.h.b16 %v849
        %v1552 = vunpack.c.l.b16 %v850
        %v1553 = vunpack.c.h.b16 %v850
        %v1554 = vunpack.c.l.b16 %v851
        %v1555 = vunpack.c.h.b16 %v851
        %v1556 = vunpack.c.l.b16 %v852
        %v1557 = vunpack.c.h.b16 %v852
        %v1558 = vunpack.c.l.b16 %v853
        %v1559 = vunpack.c.h.b16 %v853
        %v1560 = vunpack.c.l.b16 %v854
        %v1561 = vunpack.c.h.b16 %v854
        %v1562 = vunpack.c.l.b16 %v855
        %v1563 = vunpack.c.h.b16 %v855
        %v1564 = vunpack.c.l.b16 %v856
        %v1565 = vunpack.c.h.b16 %v856
        %v1566 = vunpack.c.l.b16 %v857
        %v1567 = vunpack.c.h.b16 %v857
        %v1568 = vunpack.c.l.b16 %v858
        %v1569 = vunpack.c.h.b16 %v858
        %v1570 = vunpack.c.l.b16 %v859
        %v1571 = vunpack.c.h.b16 %v859
        %v1572 = vunpack.c.l.b16 %v860
        %v1573 = vunpack.c.h.b16 %v860
        %v1574 = vunpack.c.l.b16 %v861
        %v1575 = vunpack.c.h.b16 %v861
        %v1576 = vunpack.c.l.b16 %v862
        %v1577 = vunpack.c.h.b16 %v862
        %v1578 = vunpack.c.l.b16 %v863
        %v1579 = vunpack.c.h.b16 %v863
        %v1580 = vunpack.c.l.b16 %v864
        %v1581 = vunpack.c.h.b16 %v864
        %v1582 = vunpack.c.l.b16 %v865
        %v1583 = vunpack.c.h.b16 %v865
        %v1584 = vunpack.c.l.b16 %v866
        %v1585 = vunpack.c.h.b16 %v866
        %v1586 = vunpack.c.l.b16 %v867
        %v1587 = vunpack.c.h.b16 %v867
        %v1588 = vunpack.c.l.b16 %v868
        %v1589 = vunpack.c.h.b16 %v868
        %v1590 = vunpack.c.l.b16 %v869
        %v1591 = vunpack.c.h.b16 %v869
        %v1592 = vunpack.c.l.b16 %v870
        %v1593 = vunpack.c.h.b16 %v870
        %v1594 = vunpack.c.l.b16 %v871
        %v1595 = vunpack.c.h.b16 %v871
        %v1596 = vunpack.c.l.b16 %v872
        %v1597 = vunpack.c.h.b16 %v872
        %v1598 = vunpack.c.l.b16 %v873
        %v1599 = vunpack.c.h.b16 %v873
        %v1600 = vunpack.c.l.b16 %v874
        %v1601 = vunpack.c.h.b16 %v874
        %v1602 = vunpack.c.l.b16 %v875
        %v1603 = vunpack.c.h.b16 %v875
        %v1604 = vunpack.c.l.b16 %v876
        %v1605 = vunpack.c.h.b16 %v876
        %v1606 = vunpack.c.l.b16 %v877
        %v1607 = vunpack.c.h.b16 %v877
        %v1608 = vunpack.c.l.b16 %v878
        %v1609 = vunpack.c.h.b16 %v878
        %v1610 = vunpack.c.l.b16 %v879
        %v1611 = vunpack.c.h.b16 %v879
        %v1612 = vunpack.c.l.b16 %v880
        %v1613 = vunpack.c.h.b16 %v880
        %v1614 = vunpack.c.l.b16 %v881
        %v1615 = vunpack.c.h.b16 %v881
        %v1616 = vunpack.c.l.b16 %v882
        %v1617 = vunpack.c.h.b16 %v882
        %v1618 = vunpack.c.l.b16 %v883
        %v1619 = vunpack.c.h.b16 %v883
        %v1620 = vunpack.c.l.b16 %v884
        %v1621 = vunpack.c.h.b16 %v884
        %v1622 = vunpack.c.l.b16 %v885
        %v1623 = vunpack.c.h.b16 %v885
        %v1624 = vunpack.c.l.b16 %v886
        %v1625 = vunpack.c.h.b16 %v886
        %v1626 = vunpack.c.l.b16 %v887
        %v1627 = vunpack.c.h.b16 %v887
        %v1628 = vunpack.c.l.b16 %v888
        %v1629 = vunpack.c.h.b16 %v888
        %v1630 = vunpack.c.l.b16 %v889
        %v1631 = vunpack.c.h.b16 %v889
        %v1632 = vunpack.c.l.b16 %v890
        %v1633 = vunpack.c.h.b16 %v890
        %v1634 = vunpack.c.l.b16 %v891
        %v1635 = vunpack.c.h.b16 %v891
        %v1636 = vunpack.c.l.b16 %v892
        %v1637 = vunpack.c.h.b16 %v892
        %v1638 = vunpack.c.l.b16 %v893
        %v1639 = vunpack.c.h.b16 %v893
        %v1640 = vunpack.c.l.b16 %v894
        %v1641 = vunpack.c.h.b16 %v894
        %v1642 = vunpack.c.l.b16 %v895
        %v1643 = vunpack.c.h.b16 %v895
        %v1644 = vunpack.c.l.b16 %v896
        %v1645 = vunpack.c.h.b16 %v896
        %v1646 = vunpack.c.l.b16 %v897
        %v1647 = vunpack.c.h.b16 %v897
        %v1648 = vunpack.c.l.b16 %v898
        %v1649 = vunpack.c.h.b16 %v898
        %v1650 = vunpack.c.l.b16 %v899
        %v1651 = vunpack.c.h.b16 %v899
        %v1652 = vunpack.c.l.b16 %v900
        %v1653 = vunpack.c.h.b16 %v900
        %v1654 = vunpack.c.l.b16 %v901
        %v1655 = vunpack.c.h.b16 %v901
        %v1656 = vunpack.c.l.b16 %v902
        %v1657 = vunpack.c.h.b16 %v902
        %v1658 = vunpack.c.l.b16 %v903
        %v1659 = vunpack.c.h.b16 %v903
        %v1660 = vunpack.c.l.b16 %v904
        %v1661 = vunpack.c.h.b16 %v904
        %v1662 = vunpack.c.l.b16 %v905
        %v1663 = vunpack.c.h.b16 %v905
        %v1664 = vunpack.c.l.b16 %v906
        %v1665 = vunpack.c.h.b16 %v906
        %v1666 = vunpack.c.l.b16 %v907
        %v1667 = vunpack.c.h.b16 %v907
        %v1668 = vunpack.c.l.b16 %v908
        %v1669 = vunpack.c.h.b16 %v908
        %v1670 = vunpack.c.l.b16 %v909
        %v1671 = vunpack.c.h.b16 %v909
        %v1672 = vunpack.c.l.b16 %v910
        %v1673 = vunpack.c.h.b16 %v910
        %v1674 = vunpack.c.l.b16 %v911
        %v1675 = vunpack.c.h.b16 %v911
        %v1676 = vunpack.c.l.b16 %v912
        %v1677 = vunpack.c.h.b16 %v912
        %v1678 = vunpack.c.l.b16 %v913
        %v1679 = vunpack.c.h.b16 %v913
        %v1680 = vunpack.c.l.b16 %v914
        %v1681 = vunpack.c.h.b16 %v914
        %v1682 = vunpack.c.l.b16 %v915
        %v1683 = vunpack.c.h.b16 %v915
        %v1684 = vunpack.c.l.b16 %v916
        %v1685 = vunpack.c.h.b16 %v916
        %v1686 = vunpack.c.l.b16 %v917
        %v1687 = vunpack.c.h.b16 %v917
        %v1688 = vunpack.c.l.b16 %v918
        %v1689 = vunpack.c.h.b16 %v918
        %v1690 = vunpack.c.l.b16 %v919
        %v1691 = vunpack.c.h.b16 %v919
        %v1692 = vunpack.c.l.b16 %v920
        %v1693 = vunpack.c.h.b16 %v920
        %v1694 = vunpack.c.l.b16 %v921
        %v1695 = vunpack.c.h.b16 %v921
        %v1696 = vunpack.c.l.b16 %v922
        %v1697 = vunpack.c.h.b16 %v922
        %v1698 = vunpack.c.l.b16 %v923
        %v1699 = vunpack.c.h.b16 %v923
        %v1700 = vunpack.c.l.b16 %v924
        %v1701 = vunpack.c.h.b16 %v924
        %v1702 = vunpack.c.l.b16 %v925
        %v1703 = vunpack.c.h.b16 %v925
        %v1704 = vpack.c.b16 %v1196, %v1192
        %v1705 = vpack.c.b16 %v1197, %v1193
        %v1706 = vpack.c.b16 %v1198, %v1194
        %v1707 = vpack.c.b16 %v1199, %v1195
        %v1708 = vpack.c.b16 %v1204, %v1200
        %v1709 = vpack.c.b16 %v1205, %v1201
        %v1710 = vpack.c.b16 %v1206, %v1202
        %v1711 = vpack.c.b16 %v1207, %v1203
        %v1712 = vpack.c.b16 %v1212, %v1208
        %v1713 = vpack.c.b16 %v1213, %v1209
        %v1714 = vpack.c.b16 %v1214, %v1210
        %v1715 = vpack.c.b16 %v1215, %v1211
        %v1716 = vpack.c.b16 %v1220, %v1216
        %v1717 = vpack.c.b16 %v1221, %v1217
        %v1718 = vpack.c.b16 %v1222, %v1218
        %v1719 = vpack.c.b16 %v1223, %v1219
        %v1720 = vpack.c.b16 %v1228, %v1224
        %v1721 = vpack.c.b16 %v1229, %v1225
        %v1722 = vpack.c.b16 %v1230, %v1226
        %v1723 = vpack.c.b16 %v1231, %v1227
        %v1724 = vpack.c.b16 %v1236, %v1232
        %v1725 = vpack.c.b16 %v1237, %v1233
        %v1726 = vpack.c.b16 %v1238, %v1234
        %v1727 = vpack.c.b16 %v1239, %v1235
        %v1728 = vpack.c.b16 %v1244, %v1240
        %v1729 = vpack.c.b16 %v1245, %v1241
        %v1730 = vpack.c.b16 %v1246, %v1242
        %v1731 = vpack.c.b16 %v1247, %v1243
        %v1732 = vpack.c.b16 %v1252, %v1248
        %v1733 = vpack.c.b16 %v1253, %v1249
        %v1734 = vpack.c.b16 %v1254, %v1250
        %v1735 = vpack.c.b16 %v1255, %v1251
        %v1736 = vpack.c.b16 %v1260, %v1256
        %v1737 = vpack.c.b16 %v1261, %v1257
        %v1738 = vpack.c.b16 %v1262, %v1258
        %v1739 = vpack.c.b16 %v1263, %v1259
        %v1740 = vpack.c.b16 %v1268, %v1264
        %v1741 = vpack.c.b16 %v1269, %v1265
        %v1742 = vpack.c.b16 %v1270, %v1266
        %v1743 = vpack.c.b16 %v1271, %v1267
        %v1744 = vpack.c.b16 %v1276, %v1272
        %v1745 = vpack.c.b16 %v1277, %v1273
        %v1746 = vpack.c.b16 %v1278, %v1274
        %v1747 = vpack.c.b16 %v1279, %v1275
        %v1748 = vpack.c.b16 %v1284, %v1280
        %v1749 = vpack.c.b16 %v1285, %v1281
        %v1750 = vpack.c.b16 %v1286, %v1282
        %v1751 = vpack.c.b16 %v1287, %v1283
        %v1752 = vpack.c.b16 %v1292, %v1288
        %v1753 = vpack.c.b16 %v1293, %v1289
        %v1754 = vpack.c.b16 %v1294, %v1290
        %v1755 = vpack.c.b16 %v1295, %v1291
        %v1756 = vpack.c.b16 %v1300, %v1296
        %v1757 = vpack.c.b16 %v1301, %v1297
        %v1758 = vpack.c.b16 %v1302, %v1298
        %v1759 = vpack.c.b16 %v1303, %v1299
        %v1760 = vpack.c.b16 %v1308, %v1304
        %v1761 = vpack.c.b16 %v1309, %v1305
        %v1762 = vpack.c.b16 %v1310, %v1306
        %v1763 = vpack.c.b16 %v1311, %v1307
        %v1764 = vpack.c.b16 %v1316, %v1312
        %v1765 = vpack.c.b16 %v1317, %v1313
        %v1766 = vpack.c.b16 %v1318, %v1314
        %v1767 = vpack.c.b16 %v1319, %v1315
        %v1768 = vpack.c.b16 %v1324, %v1320
        %v1769 = vpack.c.b16 %v1325, %v1321
        %v1770 = vpack.c.b16 %v1326, %v1322
        %v1771 = vpack.c.b16 %v1327, %v1323
        %v1772 = vpack.c.b16 %v1332, %v1328
        %v1773 = vpack.c.b16 %v1333, %v1329
        %v1774 = vpack.c.b16 %v1334, %v1330
        %v1775 = vpack.c.b16 %v1335, %v1331
        %v1776 = vpack.c.b16 %v1340, %v1336
        %v1777 = vpack.c.b16 %v1341, %v1337
        %v1778 = vpack.c.b16 %v1342, %v1338
        %v1779 = vpack.c.b16 %v1343, %v1339
        %v1780 = vpack.c.b16 %v1348, %v1344
        %v1781 = vpack.c.b16 %v1349, %v1345
        %v1782 = vpack.c.b16 %v1350, %v1346
        %v1783 = vpack.c.b16 %v1351, %v1347
        %v1784 = vpack.c.b16 %v1356, %v1352
        %v1785 = vpack.c.b16 %v1357, %v1353
        %v1786 = vpack.c.b16 %v1358, %v1354
        %v1787 = vpack.c.b16 %v1359, %v1355
        %v1788 = vpack.c.b16 %v1364, %v1360
        %v1789 = vpack.c.b16 %v1365, %v1361
        %v1790 = vpack.c.b16 %v1366, %v1362
        %v1791 = vpack.c.b16 %v1367, %v1363
        %v1792 = vpack.c.b16 %v1372, %v1368
        %v1793 = vpack.c.b16 %v1373, %v1369
        %v1794 = vpack.c.b16 %v1374, %v1370
        %v1795 = vpack.c.b16 %v1375, %v1371
        %v1796 = vpack.c.b16 %v1380, %v1376
        %v1797 = vpack.c.b16 %v1381, %v1377
        %v1798 = vpack.c.b16 %v1382, %v1378
        %v1799 = vpack.c.b16 %v1383, %v1379
        %v1800 = vpack.c.b16 %v1388, %v1384
        %v1801 = vpack.c.b16 %v1389, %v1385
        %v1802 = vpack.c.b16 %v1390, %v1386
        %v1803 = vpack.c.b16 %v1391, %v1387
        %v1804 = vpack.c.b16 %v1396, %v1392
        %v1805 = vpack.c.b16 %v1397, %v1393
        %v1806 = vpack.c.b16 %v1398, %v1394
        %v1807 = vpack.c.b16 %v1399, %v1395
        %v1808 = vpack.c.b16 %v1404, %v1400
        %v1809 = vpack.c.b16 %v1405, %v1401
        %v1810 = vpack.c.b16 %v1406, %v1402
        %v1811 = vpack.c.b16 %v1407, %v1403
        %v1812 = vpack.c.b16 %v1412, %v1408
        %v1813 = vpack.c.b16 %v1413, %v1409
        %v1814 = vpack.c.b16 %v1414, %v1410
        %v1815 = vpack.c.b16 %v1415, %v1411
        %v1816 = vpack.c.b16 %v1420, %v1416
        %v1817 = vpack.c.b16 %v1421, %v1417
        %v1818 = vpack.c.b16 %v1422, %v1418
        %v1819 = vpack.c.b16 %v1423, %v1419
        %v1820 = vpack.c.b16 %v1428, %v1424
        %v1821 = vpack.c.b16 %v1429, %v1425
        %v1822 = vpack.c.b16 %v1430, %v1426
        %v1823 = vpack.c.b16 %v1431, %v1427
        %v1824 = vpack.c.b16 %v1436, %v1432
        %v1825 = vpack.c.b16 %v1437, %v1433
        %v1826 = vpack.c.b16 %v1438, %v1434
        %v1827 = vpack.c.b16 %v1439, %v1435
        %v1828 = vpack.c.b16 %v1444, %v1440
        %v1829 = vpack.c.b16 %v1445, %v1441
        %v1830 = vpack.c.b16 %v1446, %v1442
        %v1831 = vpack.c.b16 %v1447, %v1443
        %v1832 = vpack.c.b16 %v1452, %v1448
        %v1833 = vpack.c.b16 %v1453, %v1449
        %v1834 = vpack.c.b16 %v1454, %v1450
        %v1835 = vpack.c.b16 %v1455, %v1451
        %v1836 = vpack.c.b16 %v1460, %v1456
        %v1837 = vpack.c.b16 %v1461, %v1457
        %v1838 = vpack.c.b16 %v1462, %v1458
        %v1839 = vpack.c.b16 %v1463, %v1459
        %v1840 = vpack.c.b16 %v1468, %v1464
        %v1841 = vpack.c.b16 %v1469, %v1465
        %v1842 = vpack.c.b16 %v1470, %v1466
        %v1843 = vpack.c.b16 %v1471, %v1467
        %v1844 = vpack.c.b16 %v1476, %v1472
        %v1845 = vpack.c.b16 %v1477, %v1473
        %v1846 = vpack.c.b16 %v1478, %v1474
        %v1847 = vpack.c.b16 %v1479, %v1475
        %v1848 = vpack.c.b16 %v1484, %v1480
        %v1849 = vpack.c.b16 %v1485, %v1481
        %v1850 = vpack.c.b16 %v1486, %v1482
        %v1851 = vpack.c.b16 %v1487, %v1483
        %v1852 = vpack.c.b16 %v1492, %v1488
        %v1853 = vpack.c.b16 %v1493, %v1489
        %v1854 = vpack.c.b16 %v1494, %v1490
        %v1855 = vpack.c.b16 %v1495, %v1491
        %v1856 = vpack.c.b16 %v1500, %v1496
        %v1857 = vpack.c.b16 %v1501, %v1497
        %v1858 = vpack.c.b16 %v1502, %v1498
        %v1859 = vpack.c.b16 %v1503, %v1499
        %v1860 = vpack.c.b16 %v1508, %v1504
        %v1861 = vpack.c.b16 %v1509, %v1505
        %v1862 = vpack.c.b16 %v1510, %v1506
        %v1863 = vpack.c.b16 %v1511, %v1507
        %v1864 = vpack.c.b16 %v1516, %v1512
        %v1865 = vpack.c.b16 %v1517, %v1513
        %v1866 = vpack.c.b16 %v1518, %v1514
        %v1867 = vpack.c.b16 %v1519, %v1515
        %v1868 = vpack.c.b16 %v1524, %v1520
        %v1869 = vpack.c.b16 %v1525, %v1521
        %v1870 = vpack.c.b16 %v1526, %v1522
        %v1871 = vpack.c.b16 %v1527, %v1523
        %v1872 = vpack.c.b16 %v1532, %v1528
        %v1873 = vpack.c.b16 %v1533, %v1529
        %v1874 = vpack.c.b16 %v1534, %v1530
        %v1875 = vpack.c.b16 %v1535, %v1531
        %v1876 = vpack.c.b16 %v1540, %v1536
        %v1877 = vpack.c.b16 %v1541, %v1537
        %v1878 = vpack.c.b16 %v1542, %v1538
        %v1879 = vpack.c.b16 %v1543, %v1539
        %v1880 = vpack.c.b16 %v1548, %v1544
        %v1881 = vpack.c.b16 %v1549, %v1545
        %v1882 = vpack.c.b16 %v1550, %v1546
        %v1883 = vpack.c.b16 %v1551, %v1547
        %v1884 = vpack.c.b16 %v1556, %v1552
        %v1885 = vpack.c.b16 %v1557, %v1553
        %v1886 = vpack.c.b16 %v1558, %v1554
        %v1887 = vpack.c.b16 %v1559, %v1555
        %v1888 = vpack.c.b16 %v1564, %v1560
        %v1889 = vpack.c.b16 %v1565, %v1561
        %v1890 = vpack.c.b16 %v1566, %v1562
        %v1891 = vpack.c.b16 %v1567, %v1563
        %v1892 = vpack.c.b16 %v1572, %v1568
        %v1893 = vpack.c.b16 %v1573, %v1569
        %v1894 = vpack.c.b16 %v1574, %v1570
        %v1895 = vpack.c.b16 %v1575, %v1571
        %v1896 = vpack.c.b16 %v1580, %v1576
        %v1897 = vpack.c.b16 %v1581, %v1577
        %v1898 = vpack.c.b16 %v1582, %v1578
        %v1899 = vpack.c.b16 %v1583, %v1579
        %v1900 = vpack.c.b16 %v1588, %v1584
        %v1901 = vpack.c.b16 %v1589, %v1585
        %v1902 = vpack.c.b16 %v1590, %v1586
        %v1903 = vpack.c.b16 %v1591, %v1587
        %v1904 = vpack.c.b16 %v1596, %v1592
        %v1905 = vpack.c.b16 %v1597, %v1593
        %v1906 = vpack.c.b16 %v1598, %v1594
        %v1907 = vpack.c.b16 %v1599, %v1595
        %v1908 = vpack.c.b16 %v1604, %v1600
        %v1909 = vpack.c.b16 %v1605, %v1601
        %v1910 = vpack.c.b16 %v1606, %v1602
        %v1911 = vpack.c.b16 %v1607, %v1603
        %v1912 = vpack.c.b16 %v1612, %v1608
        %v1913 = vpack.c.b16 %v1613, %v1609
        %v1914 = vpack.c.b16 %v1614, %v1610
        %v1915 = vpack.c.b16 %v1615, %v1611
        %v1916 = vpack.c.b16 %v1620, %v1616
        %v1917 = vpack.c.b16 %v1621, %v1617
        %v1918 = vpack.c.b16 %v1622, %v1618
        %v1919 = vpack.c.b16 %v1623, %v1619
        %v1920 = vpack.c.b16 %v1628, %v1624
        %v1921 = vpack.c.b16 %v1629, %v1625
        %v1922 = vpack.c.b16 %v1630, %v1626
        %v1923 = vpack.c.b16 %v1631, %v1627
        %v1924 = vpack.c.b16 %v1636, %v1632
        %v1925 = vpack.c.b16 %v1637, %v1633
        %v1926 = vpack.c.b16 %v1638, %v1634
        %v1927 = vpack.c.b16 %v1639, %v1635
        %v1928 = vpack.c.b16 %v1644, %v1640
        %v1929 = vpack.c.b16 %v1645, %v1641
        %v1930 = vpack.c.b16 %v1646, %v1642
        %v1931 = vpack.c.b16 %v1647, %v1643
        %v1932 = vpack.c.b16 %v1652, %v1648
        %v1933 = vpack.c.b16 %v1653, %v1649
        %v1934 = vpack.c.b16 %v1654, %v1650
        %v1935 = vpack.c.b16 %v1655, %v1651
        %v1936 = vpack.c.b16 %v1660, %v1656
        %v1937 = vpack.c.b16 %v1661, %v1657
        %v1938 = vpack.c.b16 %v1662, %v1658
        %v1939 = vpack.c.b16 %v1663, %v1659
        %v1940 = vpack.c.b16 %v1668, %v1664
        %v1941 = vpack.c.b16 %v1669, %v1665
        %v1942 = vpack.c.b16 %v1670, %v1666
        %v1943 = vpack.c.b16 %v1671, %v1667
        %v1944 = vpack.c.b16 %v1676, %v1672
        %v1945 = vpack.c.b16 %v1677, %v1673
        %v1946 = vpack.c.b16 %v1678, %v1674
        %v1947 = vpack.c.b16 %v1679, %v1675
        %v1948 = vpack.c.b16 %v1684, %v1680
        %v1949 = vpack.c.b16 %v1685, %v1681
        %v1950 = vpack.c.b16 %v1686, %v1682
        %v1951 = vpack.c.b16 %v1687, %v1683
        %v1952 = vpack.c.b16 %v1692, %v1688
        %v1953 = vpack.c.b16 %v1693, %v1689
        %v1954 = vpack.c.b16 %v1694, %v1690
        %v1955 = vpack.c.b16 %v1695, %v1691
        %v1956 = vpack.c.b16 %v1700, %v1696
        %v1957 = vpack.c.b16 %v1701, %v1697
        %v1958 = vpack.c.b16 %v1702, %v1698
        %v1959 = vpack.c.b16 %v1703, %v1699
        %2216 = vmatpush.bf16.msra.mxu0 %v1732
        %2217 = vmatpush.bf16.msra.mxu0 %v1728
        %2218 = vmatpush.bf16.msra.mxu0 %v1724
        %2219 = vmatpush.bf16.msra.mxu0 %v1720
        %2220 = vmatpush.bf16.msra.mxu0 %v1716
        %2221 = vmatpush.bf16.msra.mxu0 %v1712
        %2222 = vmatpush.bf16.msra.mxu0 %v1708
        %2223 = vmatpush.bf16.msra.mxu0 %v1704
        %2224 = vmatmul.bf16.gmra.mxu0 %v662
        %v2225 = vpop.f32.mrf.mxu0
        %v2226 = vadd.f32 %v928, %v2225
        %v2227 = vpop.f32.mrf.mxu0
        %2228 = vdwg.mxu0
        %2229 = vmatpush.bf16.msra.mxu0 %v1764
        %2230 = vmatpush.bf16.msra.mxu0 %v1760
        %2231 = vmatpush.bf16.msra.mxu0 %v1756
        %2232 = vmatpush.bf16.msra.mxu0 %v1752
        %2233 = vmatpush.bf16.msra.mxu0 %v1748
        %2234 = vmatpush.bf16.msra.mxu0 %v1744
        %2235 = vmatpush.bf16.msra.mxu0 %v1740
        %2236 = vmatpush.bf16.msra.mxu0 %v1736
        %2237 = vmatmul.bf16.gmra.mxu0 %v663
        %v2238 = vpop.f32.mrf.mxu0
        %v2239 = vadd.f32 %v2226, %v2238
        %v2240 = vpop.f32.mrf.mxu0
        %2241 = vdwg.mxu0
        %2242 = vmatpush.bf16.msra.mxu0 %v1796
        %2243 = vmatpush.bf16.msra.mxu0 %v1792
        %2244 = vmatpush.bf16.msra.mxu0 %v1788
        %2245 = vmatpush.bf16.msra.mxu0 %v1784
        %2246 = vmatpush.bf16.msra.mxu0 %v1780
        %2247 = vmatpush.bf16.msra.mxu0 %v1776
        %2248 = vmatpush.bf16.msra.mxu0 %v1772
        %2249 = vmatpush.bf16.msra.mxu0 %v1768
        %2250 = vmatmul.bf16.gmra.mxu0 %v664
        %v2251 = vpop.f32.mrf.mxu0
        %v2252 = vadd.f32 %v2239, %v2251
        %v2253 = vpop.f32.mrf.mxu0
        %2254 = vdwg.mxu0
        %2255 = vmatpush.bf16.msra.mxu0 %v1828
        %2256 = vmatpush.bf16.msra.mxu0 %v1824
        %2257 = vmatpush.bf16.msra.mxu0 %v1820
        %2258 = vmatpush.bf16.msra.mxu0 %v1816
        %2259 = vmatpush.bf16.msra.mxu0 %v1812
        %2260 = vmatpush.bf16.msra.mxu0 %v1808
        %2261 = vmatpush.bf16.msra.mxu0 %v1804
        %2262 = vmatpush.bf16.msra.mxu0 %v1800
        %2263 = vmatmul.bf16.gmra.mxu0 %v665
        %v2264 = vpop.f32.mrf.mxu0
        %v2265 = vadd.f32 %v2252, %v2264
        %v2266 = vpop.f32.mrf.mxu0
        %2267 = vdwg.mxu0
        %2268 = vmatpush.bf16.msra.mxu0 %v1860
        %2269 = vmatpush.bf16.msra.mxu0 %v1856
        %2270 = vmatpush.bf16.msra.mxu0 %v1852
        %2271 = vmatpush.bf16.msra.mxu0 %v1848
        %2272 = vmatpush.bf16.msra.mxu0 %v1844
        %2273 = vmatpush.bf16.msra.mxu0 %v1840
        %2274 = vmatpush.bf16.msra.mxu0 %v1836
        %2275 = vmatpush.bf16.msra.mxu0 %v1832
        %2276 = vmatmul.bf16.gmra.mxu0 %v666
        %v2277 = vpop.f32.mrf.mxu0
        %v2278 = vadd.f32 %v2265, %v2277
        %v2279 = vpop.f32.mrf.mxu0
        %2280 = vdwg.mxu0
        %2281 = vmatpush.bf16.msra.mxu0 %v1892
        %2282 = vmatpush.bf16.msra.mxu0 %v1888
        %2283 = vmatpush.bf16.msra.mxu0 %v1884
        %2284 = vmatpush.bf16.msra.mxu0 %v1880
        %2285 = vmatpush.bf16.msra.mxu0 %v1876
        %2286 = vmatpush.bf16.msra.mxu0 %v1872
        %2287 = vmatpush.bf16.msra.mxu0 %v1868
        %2288 = vmatpush.bf16.msra.mxu0 %v1864
        %2289 = vmatmul.bf16.gmra.mxu0 %v667
        %v2290 = vpop.f32.mrf.mxu0
        %v2291 = vadd.f32 %v2278, %v2290
        %v2292 = vpop.f32.mrf.mxu0
        %2293 = vdwg.mxu0
        %2294 = vmatpush.bf16.msra.mxu0 %v1924
        %2295 = vmatpush.bf16.msra.mxu0 %v1920
        %2296 = vmatpush.bf16.msra.mxu0 %v1916
        %2297 = vmatpush.bf16.msra.mxu0 %v1912
        %2298 = vmatpush.bf16.msra.mxu0 %v1908
        %2299 = vmatpush.bf16.msra.mxu0 %v1904
        %2300 = vmatpush.bf16.msra.mxu0 %v1900
        %2301 = vmatpush.bf16.msra.mxu0 %v1896
        %2302 = vmatmul.bf16.gmra.mxu0 %v668
        %v2303 = vpop.f32.mrf.mxu0
        %v2304 = vadd.f32 %v2291, %v2303
        %v2305 = vpop.f32.mrf.mxu0
        %2306 = vdwg.mxu0
        %2307 = vmatpush.bf16.msra.mxu0 %v1956
        %2308 = vmatpush.bf16.msra.mxu0 %v1952
        %2309 = vmatpush.bf16.msra.mxu0 %v1948
        %2310 = vmatpush.bf16.msra.mxu0 %v1944
        %2311 = vmatpush.bf16.msra.mxu0 %v1940
        %2312 = vmatpush.bf16.msra.mxu0 %v1936
        %2313 = vmatpush.bf16.msra.mxu0 %v1932
        %2314 = vmatpush.bf16.msra.mxu0 %v1928
        %2315 = vmatmul.bf16.gmra.mxu0 %v669
        %v2316 = vpop.f32.mrf.mxu0
        %v2317 = vadd.f32 %v2304, %v2316
        %v2318 = vpop.f32.mrf.mxu0
        %2319 = vdwg.mxu0
        %2320 = vmatpush.bf16.msra.mxu0 %v1733
        %2321 = vmatpush.bf16.msra.mxu0 %v1729
        %2322 = vmatpush.bf16.msra.mxu0 %v1725
        %2323 = vmatpush.bf16.msra.mxu0 %v1721
        %2324 = vmatpush.bf16.msra.mxu0 %v1717
        %2325 = vmatpush.bf16.msra.mxu0 %v1713
        %2326 = vmatpush.bf16.msra.mxu0 %v1709
        %2327 = vmatpush.bf16.msra.mxu0 %v1705
        %2328 = vmatmul.bf16.gmra.mxu0 %v662
        %v2329 = vpop.f32.mrf.mxu0
        %v2330 = vadd.f32 %v929, %v2329
        %v2331 = vpop.f32.mrf.mxu0
        %2332 = vdwg.mxu0
        %2333 = vmatpush.bf16.msra.mxu0 %v1765
        %2334 = vmatpush.bf16.msra.mxu0 %v1761
        %2335 = vmatpush.bf16.msra.mxu0 %v1757
        %2336 = vmatpush.bf16.msra.mxu0 %v1753
        %2337 = vmatpush.bf16.msra.mxu0 %v1749
        %2338 = vmatpush.bf16.msra.mxu0 %v1745
        %2339 = vmatpush.bf16.msra.mxu0 %v1741
        %2340 = vmatpush.bf16.msra.mxu0 %v1737
        %2341 = vmatmul.bf16.gmra.mxu0 %v663
        %v2342 = vpop.f32.mrf.mxu0
        %v2343 = vadd.f32 %v2330, %v2342
        %v2344 = vpop.f32.mrf.mxu0
        %2345 = vdwg.mxu0
        %2346 = vmatpush.bf16.msra.mxu0 %v1797
        %2347 = vmatpush.bf16.msra.mxu0 %v1793
        %2348 = vmatpush.bf16.msra.mxu0 %v1789
        %2349 = vmatpush.bf16.msra.mxu0 %v1785
        %2350 = vmatpush.bf16.msra.mxu0 %v1781
        %2351 = vmatpush.bf16.msra.mxu0 %v1777
        %2352 = vmatpush.bf16.msra.mxu0 %v1773
        %2353 = vmatpush.bf16.msra.mxu0 %v1769
        %2354 = vmatmul.bf16.gmra.mxu0 %v664
        %v2355 = vpop.f32.mrf.mxu0
        %v2356 = vadd.f32 %v2343, %v2355
        %v2357 = vpop.f32.mrf.mxu0
        %2358 = vdwg.mxu0
        %2359 = vmatpush.bf16.msra.mxu0 %v1829
        %2360 = vmatpush.bf16.msra.mxu0 %v1825
        %2361 = vmatpush.bf16.msra.mxu0 %v1821
        %2362 = vmatpush.bf16.msra.mxu0 %v1817
        %2363 = vmatpush.bf16.msra.mxu0 %v1813
        %2364 = vmatpush.bf16.msra.mxu0 %v1809
        %2365 = vmatpush.bf16.msra.mxu0 %v1805
        %2366 = vmatpush.bf16.msra.mxu0 %v1801
        %2367 = vmatmul.bf16.gmra.mxu0 %v665
        %v2368 = vpop.f32.mrf.mxu0
        %v2369 = vadd.f32 %v2356, %v2368
        %v2370 = vpop.f32.mrf.mxu0
        %2371 = vdwg.mxu0
        %2372 = vmatpush.bf16.msra.mxu0 %v1861
        %2373 = vmatpush.bf16.msra.mxu0 %v1857
        %2374 = vmatpush.bf16.msra.mxu0 %v1853
        %2375 = vmatpush.bf16.msra.mxu0 %v1849
        %2376 = vmatpush.bf16.msra.mxu0 %v1845
        %2377 = vmatpush.bf16.msra.mxu0 %v1841
        %2378 = vmatpush.bf16.msra.mxu0 %v1837
        %2379 = vmatpush.bf16.msra.mxu0 %v1833
        %2380 = vmatmul.bf16.gmra.mxu0 %v666
        %v2381 = vpop.f32.mrf.mxu0
        %v2382 = vadd.f32 %v2369, %v2381
        %v2383 = vpop.f32.mrf.mxu0
        %2384 = vdwg.mxu0
        %2385 = vmatpush.bf16.msra.mxu0 %v1893
        %2386 = vmatpush.bf16.msra.mxu0 %v1889
        %2387 = vmatpush.bf16.msra.mxu0 %v1885
        %2388 = vmatpush.bf16.msra.mxu0 %v1881
        %2389 = vmatpush.bf16.msra.mxu0 %v1877
        %2390 = vmatpush.bf16.msra.mxu0 %v1873
        %2391 = vmatpush.bf16.msra.mxu0 %v1869
        %2392 = vmatpush.bf16.msra.mxu0 %v1865
        %2393 = vmatmul.bf16.gmra.mxu0 %v667
        %v2394 = vpop.f32.mrf.mxu0
        %v2395 = vadd.f32 %v2382, %v2394
        %v2396 = vpop.f32.mrf.mxu0
        %2397 = vdwg.mxu0
        %2398 = vmatpush.bf16.msra.mxu0 %v1925
        %2399 = vmatpush.bf16.msra.mxu0 %v1921
        %2400 = vmatpush.bf16.msra.mxu0 %v1917
        %2401 = vmatpush.bf16.msra.mxu0 %v1913
        %2402 = vmatpush.bf16.msra.mxu0 %v1909
        %2403 = vmatpush.bf16.msra.mxu0 %v1905
        %2404 = vmatpush.bf16.msra.mxu0 %v1901
        %2405 = vmatpush.bf16.msra.mxu0 %v1897
        %2406 = vmatmul.bf16.gmra.mxu0 %v668
        %v2407 = vpop.f32.mrf.mxu0
        %v2408 = vadd.f32 %v2395, %v2407
        %v2409 = vpop.f32.mrf.mxu0
        %2410 = vdwg.mxu0
        %2411 = vmatpush.bf16.msra.mxu0 %v1957
        %2412 = vmatpush.bf16.msra.mxu0 %v1953
        %2413 = vmatpush.bf16.msra.mxu0 %v1949
        %2414 = vmatpush.bf16.msra.mxu0 %v1945
        %2415 = vmatpush.bf16.msra.mxu0 %v1941
        %2416 = vmatpush.bf16.msra.mxu0 %v1937
        %2417 = vmatpush.bf16.msra.mxu0 %v1933
        %2418 = vmatpush.bf16.msra.mxu0 %v1929
        %2419 = vmatmul.bf16.gmra.mxu0 %v669
        %v2420 = vpop.f32.mrf.mxu0
        %v2421 = vadd.f32 %v2408, %v2420
        %v2422 = vpop.f32.mrf.mxu0
        %2423 = vdwg.mxu0
        %2424 = vmatpush.bf16.msra.mxu0 %v1734
        %2425 = vmatpush.bf16.msra.mxu0 %v1730
        %2426 = vmatpush.bf16.msra.mxu0 %v1726
        %2427 = vmatpush.bf16.msra.mxu0 %v1722
        %2428 = vmatpush.bf16.msra.mxu0 %v1718
        %2429 = vmatpush.bf16.msra.mxu0 %v1714
        %2430 = vmatpush.bf16.msra.mxu0 %v1710
        %2431 = vmatpush.bf16.msra.mxu0 %v1706
        %2432 = vmatmul.bf16.gmra.mxu0 %v662
        %v2433 = vpop.f32.mrf.mxu0
        %v2434 = vadd.f32 %v930, %v2433
        %v2435 = vpop.f32.mrf.mxu0
        %2436 = vdwg.mxu0
        %2437 = vmatpush.bf16.msra.mxu0 %v1766
        %2438 = vmatpush.bf16.msra.mxu0 %v1762
        %2439 = vmatpush.bf16.msra.mxu0 %v1758
        %2440 = vmatpush.bf16.msra.mxu0 %v1754
        %2441 = vmatpush.bf16.msra.mxu0 %v1750
        %2442 = vmatpush.bf16.msra.mxu0 %v1746
        %2443 = vmatpush.bf16.msra.mxu0 %v1742
        %2444 = vmatpush.bf16.msra.mxu0 %v1738
        %2445 = vmatmul.bf16.gmra.mxu0 %v663
        %v2446 = vpop.f32.mrf.mxu0
        %v2447 = vadd.f32 %v2434, %v2446
        %v2448 = vpop.f32.mrf.mxu0
        %2449 = vdwg.mxu0
        %2450 = vmatpush.bf16.msra.mxu0 %v1798
        %2451 = vmatpush.bf16.msra.mxu0 %v1794
        %2452 = vmatpush.bf16.msra.mxu0 %v1790
        %2453 = vmatpush.bf16.msra.mxu0 %v1786
        %2454 = vmatpush.bf16.msra.mxu0 %v1782
        %2455 = vmatpush.bf16.msra.mxu0 %v1778
        %2456 = vmatpush.bf16.msra.mxu0 %v1774
        %2457 = vmatpush.bf16.msra.mxu0 %v1770
        %2458 = vmatmul.bf16.gmra.mxu0 %v664
        %v2459 = vpop.f32.mrf.mxu0
        %v2460 = vadd.f32 %v2447, %v2459
        %v2461 = vpop.f32.mrf.mxu0
        %2462 = vdwg.mxu0
        %2463 = vmatpush.bf16.msra.mxu0 %v1830
        %2464 = vmatpush.bf16.msra.mxu0 %v1826
        %2465 = vmatpush.bf16.msra.mxu0 %v1822
        %2466 = vmatpush.bf16.msra.mxu0 %v1818
        %2467 = vmatpush.bf16.msra.mxu0 %v1814
        %2468 = vmatpush.bf16.msra.mxu0 %v1810
        %2469 = vmatpush.bf16.msra.mxu0 %v1806
        %2470 = vmatpush.bf16.msra.mxu0 %v1802
        %2471 = vmatmul.bf16.gmra.mxu0 %v665
        %v2472 = vpop.f32.mrf.mxu0
        %v2473 = vadd.f32 %v2460, %v2472
        %v2474 = vpop.f32.mrf.mxu0
        %2475 = vdwg.mxu0
        %2476 = vmatpush.bf16.msra.mxu0 %v1862
        %2477 = vmatpush.bf16.msra.mxu0 %v1858
        %2478 = vmatpush.bf16.msra.mxu0 %v1854
        %2479 = vmatpush.bf16.msra.mxu0 %v1850
        %2480 = vmatpush.bf16.msra.mxu0 %v1846
        %2481 = vmatpush.bf16.msra.mxu0 %v1842
        %2482 = vmatpush.bf16.msra.mxu0 %v1838
        %2483 = vmatpush.bf16.msra.mxu0 %v1834
        %2484 = vmatmul.bf16.gmra.mxu0 %v666
        %v2485 = vpop.f32.mrf.mxu0
        %v2486 = vadd.f32 %v2473, %v2485
        %v2487 = vpop.f32.mrf.mxu0
        %2488 = vdwg.mxu0
        %2489 = vmatpush.bf16.msra.mxu0 %v1894
        %2490 = vmatpush.bf16.msra.mxu0 %v1890
        %2491 = vmatpush.bf16.msra.mxu0 %v1886
        %2492 = vmatpush.bf16.msra.mxu0 %v1882
        %2493 = vmatpush.bf16.msra.mxu0 %v1878
        %2494 = vmatpush.bf16.msra.mxu0 %v1874
        %2495 = vmatpush.bf16.msra.mxu0 %v1870
        %2496 = vmatpush.bf16.msra.mxu0 %v1866
        %2497 = vmatmul.bf16.gmra.mxu0 %v667
        %v2498 = vpop.f32.mrf.mxu0
        %v2499 = vadd.f32 %v2486, %v2498
        %v2500 = vpop.f32.mrf.mxu0
        %2501 = vdwg.mxu0
        %2502 = vmatpush.bf16.msra.mxu0 %v1926
        %2503 = vmatpush.bf16.msra.mxu0 %v1922
        %2504 = vmatpush.bf16.msra.mxu0 %v1918
        %2505 = vmatpush.bf16.msra.mxu0 %v1914
        %2506 = vmatpush.bf16.msra.mxu0 %v1910
        %2507 = vmatpush.bf16.msra.mxu0 %v1906
        %2508 = vmatpush.bf16.msra.mxu0 %v1902
        %2509 = vmatpush.bf16.msra.mxu0 %v1898
        %2510 = vmatmul.bf16.gmra.mxu0 %v668
        %v2511 = vpop.f32.mrf.mxu0
        %v2512 = vadd.f32 %v2499, %v2511
        %v2513 = vpop.f32.mrf.mxu0
        %2514 = vdwg.mxu0
        %2515 = vmatpush.bf16.msra.mxu0 %v1958
        %2516 = vmatpush.bf16.msra.mxu0 %v1954
        %2517 = vmatpush.bf16.msra.mxu0 %v1950
        %2518 = vmatpush.bf16.msra.mxu0 %v1946
        %2519 = vmatpush.bf16.msra.mxu0 %v1942
        %2520 = vmatpush.bf16.msra.mxu0 %v1938
        %2521 = vmatpush.bf16.msra.mxu0 %v1934
        %2522 = vmatpush.bf16.msra.mxu0 %v1930
        %2523 = vmatmul.bf16.gmra.mxu0 %v669
        %v2524 = vpop.f32.mrf.mxu0
        %v2525 = vadd.f32 %v2512, %v2524
        %v2526 = vpop.f32.mrf.mxu0
        %2527 = vdwg.mxu0
        %2528 = vmatpush.bf16.msra.mxu0 %v1735
        %2529 = vmatpush.bf16.msra.mxu0 %v1731
        %2530 = vmatpush.bf16.msra.mxu0 %v1727
        %2531 = vmatpush.bf16.msra.mxu0 %v1723
        %2532 = vmatpush.bf16.msra.mxu0 %v1719
        %2533 = vmatpush.bf16.msra.mxu0 %v1715
        %2534 = vmatpush.bf16.msra.mxu0 %v1711
        %2535 = vmatpush.bf16.msra.mxu0 %v1707
        %2536 = vmatmul.bf16.gmra.mxu0 %v662
        %v2537 = vpop.f32.mrf.mxu0
        %v2538 = vadd.f32 %v931, %v2537
        %v2539 = vpop.f32.mrf.mxu0
        %2540 = vdwg.mxu0
        %2541 = vmatpush.bf16.msra.mxu0 %v1767
        %2542 = vmatpush.bf16.msra.mxu0 %v1763
        %2543 = vmatpush.bf16.msra.mxu0 %v1759
        %2544 = vmatpush.bf16.msra.mxu0 %v1755
        %2545 = vmatpush.bf16.msra.mxu0 %v1751
        %2546 = vmatpush.bf16.msra.mxu0 %v1747
        %2547 = vmatpush.bf16.msra.mxu0 %v1743
        %2548 = vmatpush.bf16.msra.mxu0 %v1739
        %2549 = vmatmul.bf16.gmra.mxu0 %v663
        %v2550 = vpop.f32.mrf.mxu0
        %v2551 = vadd.f32 %v2538, %v2550
        %v2552 = vpop.f32.mrf.mxu0
        %2553 = vdwg.mxu0
        %2554 = vmatpush.bf16.msra.mxu0 %v1799
        %2555 = vmatpush.bf16.msra.mxu0 %v1795
        %2556 = vmatpush.bf16.msra.mxu0 %v1791
        %2557 = vmatpush.bf16.msra.mxu0 %v1787
        %2558 = vmatpush.bf16.msra.mxu0 %v1783
        %2559 = vmatpush.bf16.msra.mxu0 %v1779
        %2560 = vmatpush.bf16.msra.mxu0 %v1775
        %2561 = vmatpush.bf16.msra.mxu0 %v1771
        %2562 = vmatmul.bf16.gmra.mxu0 %v664
        %v2563 = vpop.f32.mrf.mxu0
        %v2564 = vadd.f32 %v2551, %v2563
        %v2565 = vpop.f32.mrf.mxu0
        %2566 = vdwg.mxu0
        %2567 = vmatpush.bf16.msra.mxu0 %v1831
        %2568 = vmatpush.bf16.msra.mxu0 %v1827
        %2569 = vmatpush.bf16.msra.mxu0 %v1823
        %2570 = vmatpush.bf16.msra.mxu0 %v1819
        %2571 = vmatpush.bf16.msra.mxu0 %v1815
        %2572 = vmatpush.bf16.msra.mxu0 %v1811
        %2573 = vmatpush.bf16.msra.mxu0 %v1807
        %2574 = vmatpush.bf16.msra.mxu0 %v1803
        %2575 = vmatmul.bf16.gmra.mxu0 %v665
        %v2576 = vpop.f32.mrf.mxu0
        %v2577 = vadd.f32 %v2564, %v2576
        %v2578 = vpop.f32.mrf.mxu0
        %2579 = vdwg.mxu0
        %2580 = vmatpush.bf16.msra.mxu0 %v1863
        %2581 = vmatpush.bf16.msra.mxu0 %v1859
        %2582 = vmatpush.bf16.msra.mxu0 %v1855
        %2583 = vmatpush.bf16.msra.mxu0 %v1851
        %2584 = vmatpush.bf16.msra.mxu0 %v1847
        %2585 = vmatpush.bf16.msra.mxu0 %v1843
        %2586 = vmatpush.bf16.msra.mxu0 %v1839
        %2587 = vmatpush.bf16.msra.mxu0 %v1835
        %2588 = vmatmul.bf16.gmra.mxu0 %v666
        %v2589 = vpop.f32.mrf.mxu0
        %v2590 = vadd.f32 %v2577, %v2589
        %v2591 = vpop.f32.mrf.mxu0
        %2592 = vdwg.mxu0
        %2593 = vmatpush.bf16.msra.mxu0 %v1895
        %2594 = vmatpush.bf16.msra.mxu0 %v1891
        %2595 = vmatpush.bf16.msra.mxu0 %v1887
        %2596 = vmatpush.bf16.msra.mxu0 %v1883
        %2597 = vmatpush.bf16.msra.mxu0 %v1879
        %2598 = vmatpush.bf16.msra.mxu0 %v1875
        %2599 = vmatpush.bf16.msra.mxu0 %v1871
        %2600 = vmatpush.bf16.msra.mxu0 %v1867
        %2601 = vmatmul.bf16.gmra.mxu0 %v667
        %v2602 = vpop.f32.mrf.mxu0
        %v2603 = vadd.f32 %v2590, %v2602
        %v2604 = vpop.f32.mrf.mxu0
        %2605 = vdwg.mxu0
        %2606 = vmatpush.bf16.msra.mxu0 %v1927
        %2607 = vmatpush.bf16.msra.mxu0 %v1923
        %2608 = vmatpush.bf16.msra.mxu0 %v1919
        %2609 = vmatpush.bf16.msra.mxu0 %v1915
        %2610 = vmatpush.bf16.msra.mxu0 %v1911
        %2611 = vmatpush.bf16.msra.mxu0 %v1907
        %2612 = vmatpush.bf16.msra.mxu0 %v1903
        %2613 = vmatpush.bf16.msra.mxu0 %v1899
        %2614 = vmatmul.bf16.gmra.mxu0 %v668
        %v2615 = vpop.f32.mrf.mxu0
        %v2616 = vadd.f32 %v2603, %v2615
        %v2617 = vpop.f32.mrf.mxu0
        %2618 = vdwg.mxu0
        %2619 = vmatpush.bf16.msra.mxu0 %v1959
        %2620 = vmatpush.bf16.msra.mxu0 %v1955
        %2621 = vmatpush.bf16.msra.mxu0 %v1951
        %2622 = vmatpush.bf16.msra.mxu0 %v1947
        %2623 = vmatpush.bf16.msra.mxu0 %v1943
        %2624 = vmatpush.bf16.msra.mxu0 %v1939
        %2625 = vmatpush.bf16.msra.mxu0 %v1935
        %2626 = vmatpush.bf16.msra.mxu0 %v1931
        %2627 = vmatmul.bf16.gmra.mxu0 %v669
        %v2628 = vpop.f32.mrf.mxu0
        %v2629 = vadd.f32 %v2616, %v2628
        %v2630 = vpop.f32.mrf.mxu0
        %2631 = vdwg.mxu0
        %v2632 = vtanh.pop %v2317
        %v2633 = vtanh.pop %v2421
        %v2634 = vtanh.pop %v2525
        %v2635 = vtanh.pop %v2629
        %v2636 = vpack.c.bf16 %v2632, %v2632
        %v2637 = vpack.c.bf16 %v2633, %v2633
        %v2638 = vpack.c.bf16 %v2634, %v2634
        %v2639 = vpack.c.bf16 %v2635, %v2635
        %v2640 = vld [vmem:[#allocation11] sm:$0xf]
        %v2641 = vld [vmem:[#allocation11 + $0x4] sm:$0xf]
        %v2642 = vld [vmem:[#allocation11 + $0x8] sm:$0xf]
        %v2643 = vld [vmem:[#allocation11 + $0xc] sm:$0xf]
        %v2644 = vld [vmem:[#allocation11 + $0x10] sm:$0xf]
        %v2645 = vld [vmem:[#allocation11 + $0x14] sm:$0xf]
        %v2646 = vld [vmem:[#allocation11 + $0x18] sm:$0xf]
        %v2647 = vld [vmem:[#allocation11 + $0x1c] sm:$0xf]
        %v2648 = vld [vmem:[#allocation11 + $0x20] sm:$0xf]
        %v2649 = vld [vmem:[#allocation11 + $0x24] sm:$0xf]
        %v2650 = vld [vmem:[#allocation11 + $0x28] sm:$0xf]
        %v2651 = vld [vmem:[#allocation11 + $0x2c] sm:$0xf]
        %v2652 = vld [vmem:[#allocation11 + $0x30] sm:$0xf]
        %v2653 = vld [vmem:[#allocation11 + $0x34] sm:$0xf]
        %v2654 = vld [vmem:[#allocation11 + $0x38] sm:$0xf]
        %v2655 = vld [vmem:[#allocation11 + $0x3c] sm:$0xf]
        %v2656 = vld [vmem:[#allocation11 + $0x40] sm:$0xf]
        %v2657 = vld [vmem:[#allocation11 + $0x44] sm:$0xf]
        %v2658 = vld [vmem:[#allocation11 + $0x48] sm:$0xf]
        %v2659 = vld [vmem:[#allocation11 + $0x4c] sm:$0xf]
        %v2660 = vld [vmem:[#allocation11 + $0x50] sm:$0xf]
        %v2661 = vld [vmem:[#allocation11 + $0x54] sm:$0xf]
        %v2662 = vld [vmem:[#allocation11 + $0x58] sm:$0xf]
        %v2663 = vld [vmem:[#allocation11 + $0x5c] sm:$0xf]
        %v2664 = vld [vmem:[#allocation11 + $0x60] sm:$0xf]
        %v2665 = vld [vmem:[#allocation11 + $0x64] sm:$0xf]
        %v2666 = vld [vmem:[#allocation11 + $0x68] sm:$0xf]
        %v2667 = vld [vmem:[#allocation11 + $0x6c] sm:$0xf]
        %v2668 = vld [vmem:[#allocation11 + $0x70] sm:$0xf]
        %v2669 = vld [vmem:[#allocation11 + $0x74] sm:$0xf]
        %v2670 = vld [vmem:[#allocation11 + $0x78] sm:$0xf]
        %v2671 = vld [vmem:[#allocation11 + $0x7c] sm:$0xf]
        %v2672 = vld [vmem:[#allocation11 + $0x80] sm:$0xf]
        %v2673 = vld [vmem:[#allocation11 + $0x84] sm:$0xf]
        %v2674 = vld [vmem:[#allocation11 + $0x88] sm:$0xf]
        %v2675 = vld [vmem:[#allocation11 + $0x8c] sm:$0xf]
        %v2676 = vld [vmem:[#allocation11 + $0x90] sm:$0xf]
        %v2677 = vld [vmem:[#allocation11 + $0x94] sm:$0xf]
        %v2678 = vld [vmem:[#allocation11 + $0x98] sm:$0xf]
        %v2679 = vld [vmem:[#allocation11 + $0x9c] sm:$0xf]
        %v2680 = vld [vmem:[#allocation11 + $0xa0] sm:$0xf]
        %v2681 = vld [vmem:[#allocation11 + $0xa4] sm:$0xf]
        %v2682 = vld [vmem:[#allocation11 + $0xa8] sm:$0xf]
        %v2683 = vld [vmem:[#allocation11 + $0xac] sm:$0xf]
        %v2684 = vld [vmem:[#allocation11 + $0xb0] sm:$0xf]
        %v2685 = vld [vmem:[#allocation11 + $0xb4] sm:$0xf]
        %v2686 = vld [vmem:[#allocation11 + $0xb8] sm:$0xf]
        %v2687 = vld [vmem:[#allocation11 + $0xbc] sm:$0xf]
        %v2688 = vld [vmem:[#allocation11 + $0xc0] sm:$0xf]
        %v2689 = vld [vmem:[#allocation11 + $0xc4] sm:$0xf]
        %v2690 = vld [vmem:[#allocation11 + $0xc8] sm:$0xf]
        %v2691 = vld [vmem:[#allocation11 + $0xcc] sm:$0xf]
        %v2692 = vld [vmem:[#allocation11 + $0xd0] sm:$0xf]
        %v2693 = vld [vmem:[#allocation11 + $0xd4] sm:$0xf]
        %v2694 = vld [vmem:[#allocation11 + $0xd8] sm:$0xf]
        %v2695 = vld [vmem:[#allocation11 + $0xdc] sm:$0xf]
        %v2696 = vld [vmem:[#allocation11 + $0xe0] sm:$0xf]
        %v2697 = vld [vmem:[#allocation11 + $0xe4] sm:$0xf]
        %v2698 = vld [vmem:[#allocation11 + $0xe8] sm:$0xf]
        %v2699 = vld [vmem:[#allocation11 + $0xec] sm:$0xf]
        %v2700 = vld [vmem:[#allocation11 + $0xf0] sm:$0xf]
        %v2701 = vld [vmem:[#allocation11 + $0xf4] sm:$0xf]
        %v2702 = vld [vmem:[#allocation11 + $0xf8] sm:$0xf]
        %v2703 = vld [vmem:[#allocation11 + $0xfc] sm:$0xf]
        %v2704 = vld [vmem:[%s6] sm:$0x1]
        %v2706 = vperm.slane %v2704, 0
        %v2772 = vunpack.c.l.b16 %v2640
        %v2773 = vunpack.c.l.b16 %v2641
        %v2774 = vunpack.c.l.b16 %v2642
        %v2775 = vunpack.c.l.b16 %v2643
        %v2776 = vunpack.c.l.b16 %v2644
        %v2777 = vunpack.c.l.b16 %v2645
        %v2778 = vunpack.c.l.b16 %v2646
        %v2779 = vunpack.c.l.b16 %v2647
        %v2780 = vunpack.c.l.b16 %v2648
        %v2781 = vunpack.c.l.b16 %v2649
        %v2782 = vunpack.c.l.b16 %v2650
        %v2783 = vunpack.c.l.b16 %v2651
        %v2784 = vunpack.c.l.b16 %v2652
        %v2785 = vunpack.c.l.b16 %v2653
        %v2786 = vunpack.c.l.b16 %v2654
        %v2787 = vunpack.c.l.b16 %v2655
        %v2788 = vunpack.c.l.b16 %v2656
        %v2789 = vunpack.c.l.b16 %v2657
        %v2790 = vunpack.c.l.b16 %v2658
        %v2791 = vunpack.c.l.b16 %v2659
        %v2792 = vunpack.c.l.b16 %v2660
        %v2793 = vunpack.c.l.b16 %v2661
        %v2794 = vunpack.c.l.b16 %v2662
        %v2795 = vunpack.c.l.b16 %v2663
        %v2796 = vunpack.c.l.b16 %v2664
        %v2797 = vunpack.c.l.b16 %v2665
        %v2798 = vunpack.c.l.b16 %v2666
        %v2799 = vunpack.c.l.b16 %v2667
        %v2800 = vunpack.c.l.b16 %v2668
        %v2801 = vunpack.c.l.b16 %v2669
        %v2802 = vunpack.c.l.b16 %v2670
        %v2803 = vunpack.c.l.b16 %v2671
        %v2804 = vunpack.c.l.b16 %v2672
        %v2805 = vunpack.c.l.b16 %v2673
        %v2806 = vunpack.c.l.b16 %v2674
        %v2807 = vunpack.c.l.b16 %v2675
        %v2808 = vunpack.c.l.b16 %v2676
        %v2809 = vunpack.c.l.b16 %v2677
        %v2810 = vunpack.c.l.b16 %v2678
        %v2811 = vunpack.c.l.b16 %v2679
        %v2812 = vunpack.c.l.b16 %v2680
        %v2813 = vunpack.c.l.b16 %v2681
        %v2814 = vunpack.c.l.b16 %v2682
        %v2815 = vunpack.c.l.b16 %v2683
        %v2816 = vunpack.c.l.b16 %v2684
        %v2817 = vunpack.c.l.b16 %v2685
        %v2818 = vunpack.c.l.b16 %v2686
        %v2819 = vunpack.c.l.b16 %v2687
        %v2820 = vunpack.c.l.b16 %v2688
        %v2821 = vunpack.c.l.b16 %v2689
        %v2822 = vunpack.c.l.b16 %v2690
        %v2823 = vunpack.c.l.b16 %v2691
        %v2824 = vunpack.c.l.b16 %v2692
        %v2825 = vunpack.c.l.b16 %v2693
        %v2826 = vunpack.c.l.b16 %v2694
        %v2827 = vunpack.c.l.b16 %v2695
        %v2828 = vunpack.c.l.b16 %v2696
        %v2829 = vunpack.c.l.b16 %v2697
        %v2830 = vunpack.c.l.b16 %v2698
        %v2831 = vunpack.c.l.b16 %v2699
        %v2832 = vunpack.c.l.b16 %v2700
        %v2833 = vunpack.c.l.b16 %v2701
        %v2834 = vunpack.c.l.b16 %v2702
        %v2835 = vunpack.c.l.b16 %v2703
        %v2836 = vpack.c.b16 %v2773, %v2772
        %v2837 = vpack.c.b16 %v2775, %v2774
        %v2838 = vpack.c.b16 %v2777, %v2776
        %v2839 = vpack.c.b16 %v2779, %v2778
        %v2840 = vpack.c.b16 %v2781, %v2780
        %v2841 = vpack.c.b16 %v2783, %v2782
        %v2842 = vpack.c.b16 %v2785, %v2784
        %v2843 = vpack.c.b16 %v2787, %v2786
        %v2844 = vpack.c.b16 %v2789, %v2788
        %v2845 = vpack.c.b16 %v2791, %v2790
        %v2846 = vpack.c.b16 %v2793, %v2792
        %v2847 = vpack.c.b16 %v2795, %v2794
        %v2848 = vpack.c.b16 %v2797, %v2796
        %v2849 = vpack.c.b16 %v2799, %v2798
        %v2850 = vpack.c.b16 %v2801, %v2800
        %v2851 = vpack.c.b16 %v2803, %v2802
        %v2852 = vpack.c.b16 %v2805, %v2804
        %v2853 = vpack.c.b16 %v2807, %v2806
        %v2854 = vpack.c.b16 %v2809, %v2808
        %v2855 = vpack.c.b16 %v2811, %v2810
        %v2856 = vpack.c.b16 %v2813, %v2812
        %v2857 = vpack.c.b16 %v2815, %v2814
        %v2858 = vpack.c.b16 %v2817, %v2816
        %v2859 = vpack.c.b16 %v2819, %v2818
        %v2860 = vpack.c.b16 %v2821, %v2820
        %v2861 = vpack.c.b16 %v2823, %v2822
        %v2862 = vpack.c.b16 %v2825, %v2824
        %v2863 = vpack.c.b16 %v2827, %v2826
        %v2864 = vpack.c.b16 %v2829, %v2828
        %v2865 = vpack.c.b16 %v2831, %v2830
        %v2866 = vpack.c.b16 %v2833, %v2832
        %v2867 = vpack.c.b16 %v2835, %v2834
        %2900 = vmatpush.bf16.msra.mxu0 %v2843
        %2901 = vmatpush.bf16.msra.mxu0 %v2842
        %2902 = vmatpush.bf16.msra.mxu0 %v2841
        %2903 = vmatpush.bf16.msra.mxu0 %v2840
        %2904 = vmatpush.bf16.msra.mxu0 %v2839
        %2905 = vmatpush.bf16.msra.mxu0 %v2838
        %2906 = vmatpush.bf16.msra.mxu0 %v2837
        %2907 = vmatpush.bf16.msra.mxu0 %v2836
        %2908 = vmatmul.bf16.gmra.mxu0 %v2636
        %v2909 = vpop.f32.mrf.mxu0
        %v2910 = vadd.f32 %v2706, %v2909
        %v2911 = vpop.f32.mrf.mxu0
        %2912 = vdwg.mxu0
        %2913 = vmatpush.bf16.msra.mxu0 %v2851
        %2914 = vmatpush.bf16.msra.mxu0 %v2850
        %2915 = vmatpush.bf16.msra.mxu0 %v2849
        %2916 = vmatpush.bf16.msra.mxu0 %v2848
        %2917 = vmatpush.bf16.msra.mxu0 %v2847
        %2918 = vmatpush.bf16.msra.mxu0 %v2846
        %2919 = vmatpush.bf16.msra.mxu0 %v2845
        %2920 = vmatpush.bf16.msra.mxu0 %v2844
        %2921 = vmatmul.bf16.gmra.mxu0 %v2637
        %v2922 = vpop.f32.mrf.mxu0
        %v2923 = vadd.f32 %v2910, %v2922
        %v2924 = vpop.f32.mrf.mxu0
        %2925 = vdwg.mxu0
        %2926 = vmatpush.bf16.msra.mxu0 %v2859
        %2927 = vmatpush.bf16.msra.mxu0 %v2858
        %2928 = vmatpush.bf16.msra.mxu0 %v2857
        %2929 = vmatpush.bf16.msra.mxu0 %v2856
        %2930 = vmatpush.bf16.msra.mxu0 %v2855
        %2931 = vmatpush.bf16.msra.mxu0 %v2854
        %2932 = vmatpush.bf16.msra.mxu0 %v2853
        %2933 = vmatpush.bf16.msra.mxu0 %v2852
        %2934 = vmatmul.bf16.gmra.mxu0 %v2638
        %v2935 = vpop.f32.mrf.mxu0
        %v2936 = vadd.f32 %v2923, %v2935
        %v2937 = vpop.f32.mrf.mxu0
        %2938 = vdwg.mxu0
        %2939 = vmatpush.bf16.msra.mxu0 %v2867
        %2940 = vmatpush.bf16.msra.mxu0 %v2866
        %2941 = vmatpush.bf16.msra.mxu0 %v2865
        %2942 = vmatpush.bf16.msra.mxu0 %v2864
        %2943 = vmatpush.bf16.msra.mxu0 %v2863
        %2944 = vmatpush.bf16.msra.mxu0 %v2862
        %2945 = vmatpush.bf16.msra.mxu0 %v2861
        %2946 = vmatpush.bf16.msra.mxu0 %v2860
        %2947 = vmatmul.bf16.gmra.mxu0 %v2639
        %v2948 = vpop.f32.mrf.mxu0
        %v2949 = vadd.f32 %v2936, %v2948
        %v2950 = vpop.f32.mrf.mxu0
        %2951 = vdwg.mxu0
        %2952 = vst [vmem:[%s422] sm:$0xff] %v2949
        %p2953 = scmp.eq.s32.totalorder %s37, 0
        // Predicated region
        $region73: #{tpu_custom_call.1} parent=47 // pred_check
          %p2954 = pneg %p2953
        $region74: #{tpu_custom_call.1} parent=47 // pred_check_branch
          %2956 = sbr.rel (%p2954) target = $region76
        $region75: #{tpu_custom_call.1} parent=47 // pred_region
          %vm2957 = vcmask 253952
          %2958 = vst.msk [vmem:[%s428] sm:$0x1] %vm2957, 0.0
        $region76: #{tpu_custom_call.1} parent=47 // pred_fallthru
          _
        %v2959 = vld [vmem:[%s428] sm:$0x1]
        %v2960 = vsel %vm546, %v430, 0.0
        %v2961 = vrot.slane %v2960, 4
        %v2962 = vadd.f32 %v2960, %v2961
        %v2963 = vrot.slane %v2962, 2
        %v2964 = vadd.f32 %v2962, %v2963
        %v2965 = vrot.slane %v2964, 1
        %v2966 = vadd.f32 %v2964, %v2965
        %v2967 = vadd.f32 %v2959, %v2966
        %vm2968 = vcmask 253952
        %2969 = vst.msk [vmem:[%s428] sm:$0x1] %vm2968, %v2967
        // Predicated region
        $region77: #{tpu_custom_call.1} parent=47 // pred_check
          %p2970 = pneg %p2953
        $region78: #{tpu_custom_call.1} parent=47 // pred_check_branch
          %2972 = sbr.rel (%p2970) target = $region80
        $region79: #{tpu_custom_call.1} parent=47 // pred_region
          %v2973 = vld [vmem:[%s428] sm:$0x1]
          %v2974 = vmul.f32 %v2973, 0.125
          %2975 = vst.msk [vmem:[%s428] sm:$0x1] %vm2968, %v2974
        $region80: #{tpu_custom_call.1} parent=47 // pred_fallthru
          _
        %s2976 = sand.u32 %s208, 1
        %s2977 = scalar_lea.sflag [#allocation4], %s2976
        %s2978 = sand.u32 %s208, 1
        %s2979 = smul.addr %s2978, 8
        %s2980 = scalar_lea.vmem [#allocation13], %s2979
        %s2981 = sand.u32 %s234, 1
        %s2982 = scalar_lea.sflag [#allocation15], %s2981
        %s2983 = sand.u32 %s234, 1
        %s2984 = scalar_lea.vmem [#allocation14], %s2983
        // Predicated region
        $region81: #{tpu_custom_call.1} parent=47 // pred_check
          %p2985 = pneg %p218
        $region82: #{tpu_custom_call.1} parent=47 // pred_check_branch
          %2987 = sbr.rel (%p2985) target = $region84
        $region83: #{tpu_custom_call.1} parent=47 // pred_region
          %2989 = vsyncadd %s2977, 0
          %s2990 = sadd.s32 %s37, %s36
          %s2991 = smul.addr %s2990, 8
          %s2992 = scalar_lea.hbm %s7, %s2991
          %s2994 = sshll.u32 %s2980, 4
          %s2995 = int_to_ptr.vmem [resolvable:$true] %s2994
          %s2996 = sshll.u32 %s2992, 4
          %s2997 = int_to_ptr.hbm [resolvable:$true] %s2996
          %2999 = dma.vmem_to_hbm [thread:$0]  %s2995, 128, %s2997, %s2977
        $region84: #{tpu_custom_call.1} parent=47 // pred_fallthru
          _
        // Predicated region
        $region85: #{tpu_custom_call.1} parent=47 // pred_check
          %p3000 = pneg %p244
        $region86: #{tpu_custom_call.1} parent=47 // pred_check_branch
          %3002 = sbr.rel (%p3000) target = $region88
        $region87: #{tpu_custom_call.1} parent=47 // pred_region
          %3004 = vsyncadd %s2982, 0
          %s3005 = scalar_lea.hbm %s8, %s36
          %s3007 = sshll.u32 %s2984, 4
          %s3008 = int_to_ptr.vmem [resolvable:$true] %s3007
          %s3009 = sshll.u32 %s3005, 4
          %s3010 = int_to_ptr.hbm [resolvable:$true] %s3009
          %3012 = dma.vmem_to_hbm [thread:$0]  %s3008, 16, %s3010, %s2982
        $region88: #{tpu_custom_call.1} parent=47 // pred_fallthru
          _
      $region48: #{tpu_custom_call.1} parent=5 // pred_fallthru
        _
      %p3013 = scmp.le.s32.totalorder 2, %s27
      // Predicated region
      $region89: #{tpu_custom_call.1} parent=5 // pred_check
        %p3014 = pneg %p3013
      $region90: #{tpu_custom_call.1} parent=5 // pred_check_branch
        %3016 = sbr.rel (%p3014) target = $region92
      $region91: #{tpu_custom_call.1} parent=5 // pred_region
        %s3017 = ssub.s32 %s27, 2
        // Predicated region
        $region93: #{tpu_custom_call.1} parent=91 // pred_check
          %p3018 = pneg %p224
        $region94: #{tpu_custom_call.1} parent=91 // pred_check_branch
          %3020 = sbr.rel (%p3018) target = $region96
        $region95: #{tpu_custom_call.1} parent=91 // pred_region
          %s3021 = sand.u32 %s209, 1
          %s3022 = scalar_lea.sflag [#allocation4], %s3021
          %s3023 = sand.u32 %s209, 1
          %s3024 = smul.addr %s3023, 8
          %s3025 = scalar_lea.vmem [#allocation13], %s3024
          %3027 = dma.done %s3022, 128
        $region96: #{tpu_custom_call.1} parent=91 // pred_fallthru
          _
        // Predicated region
        $region97: #{tpu_custom_call.1} parent=91 // pred_check
          %p3028 = pneg %p250
        $region98: #{tpu_custom_call.1} parent=91 // pred_check_branch
          %3030 = sbr.rel (%p3028) target = $region100
        $region99: #{tpu_custom_call.1} parent=91 // pred_region
          %s3031 = sand.u32 %s235, 1
          %s3032 = scalar_lea.sflag [#allocation15], %s3031
          %s3033 = sand.u32 %s235, 1
          %s3034 = scalar_lea.vmem [#allocation14], %s3033
          %3036 = dma.done %s3032, 16
        $region100: #{tpu_custom_call.1} parent=91 // pred_fallthru
          _
      $region92: #{tpu_custom_call.1} parent=5 // pred_fallthru
        _
    $region6: #{tpu_custom_call.1} parent=1 // loop_footer
      %s31 = sadd.s32 1, %s27
    $region7: #{tpu_custom_call.1} parent=1 // loop_footer_branch
      %26 = sbr.rel target = $region3
    $region8: #{tpu_custom_call.1} parent=1 // loop_exit
      _
    %3037 = vsyncpa [#allocation3], 1
    %s3038 = scalar_lea.sflag [#allocation3], 1
    %3039 = vsyncpa %s3038, 1
    %3040 = vsyncpa [#allocation6], 1
    %3041 = vsyncpa [#allocation9], 1
    %3042 = vsyncpa [#allocation12], 1
    %3043 = vsyncpa [#allocation4], 1
    %s3044 = scalar_lea.sflag [#allocation4], 1
    %3045 = vsyncpa %s3044, 1
    %3046 = vsyncpa [#allocation15], 1
    %s3047 = scalar_lea.sflag [#allocation15], 1
    %3048 = vsyncpa %s3047, 1

</llo_original>
